<compile_context>
chip_gen: v5e
topology: v5e:2x2
jax: 0.10.0
libtpu: 0.0.40
codegen_flags: <defaults>
</compile_context>

<pallas_src>
import math

import jax
import jax.numpy as jnp
from jax.experimental import pallas as pl
from jax.experimental.pallas import tpu as pltpu

_EPS_BN = 1e-5
_EPS_LN = 1e-5


def _largest_divisor(n, cap):
    cap = max(1, min(cap, n))
    for d in range(cap, 0, -1):
        if n % d == 0:
            return d
    return 1


# ----------------------------------------------------------------------------
# Kernel 1: causal temporal Conv1d (im2col -> one MXU matmul per sample)
#           + BatchNorm1d (running stats folded to scale/shift) + GLU
#           + positional embedding, plus the 1x1 residual Conv1d.
#           Processes `tile_b` batch elements per grid step ("parallel").
#           Layout is NCW (time on the lane axis) so outputs feed the next
#           stage without any transpose.
# ----------------------------------------------------------------------------
def _temporal_kernel(x_ref, wflat_ref, scale_ref, shift_ref, pe_ref,
                     wres_ref, bres_ref, t_ref, res_ref, im_ref):
    tile_b, cin, t_len = x_ref.shape
    k_taps = im_ref.shape[0] // cin
    ct = t_ref.shape[1]

    wflat = wflat_ref[...]                        # (2Ct, K*Cin) bf16
    wres = wres_ref[...]                          # (Cs, Cin)    bf16
    scale = scale_ref[...]                        # (2Ct, 1)     f32
    shift = shift_ref[...]                        # (2Ct, 1)     f32
    pe = pe_ref[...]                              # (Ct, T)      f32
    bres = bres_ref[...]                          # (Cs, 1)      f32

    # Zero the im2col scratch once per grid step: only the causal left-pad
    # triangle keeps the zeros; the data region is fully rewritten per sample.
    im_ref[...] = jnp.zeros_like(im_ref)

    for b in range(tile_b):                       # static unroll over the tile
        x = x_ref[b]                              # (Cin, T) f32

        # im2col with implicit causal left-pad: row block k holds x shifted
        # right by (K-1-k) time steps; zeros enter from the left.
        for k in range(k_taps):
            s = k_taps - 1 - k
            im_ref[pl.ds(k * cin, cin), pl.ds(s, t_len - s)] = x[:, :t_len - s]

        # single MXU matmul: (2Ct, K*Cin) @ (K*Cin, T) -> (2Ct, T), f32 acc
        y = jnp.dot(wflat, im_ref[...].astype(jnp.bfloat16),
                    preferred_element_type=jnp.float32)

        # Conv bias + BatchNorm1d folded into a per-channel affine.
        # TODO(synk): training-mode BN needs cross-batch statistics; eval-mode
        # running stats are used so the batch axis can tile.
        y = y * scale + shift

        # GLU over the channel axis, then add the positional embedding (Ct, T).
        t_ref[b] = y[:ct, :] * jax.nn.sigmoid(y[ct:, :]) + pe

        # residual 1x1 Conv1d on the original (unpadded) input.
        res_ref[b] = jnp.dot(wres, x.astype(jnp.bfloat16),
                             preferred_element_type=jnp.float32) + bres


# ----------------------------------------------------------------------------
# Kernel 2: ARMAConv (num_stacks=1, num_layers=1, dropout=0) on the
#           block-diagonal temporally-batched graph:
#           out = GELU( A_blk @ (X @ W_init) + X @ W_root + bias )
#           applied independently to every block of N consecutive node rows.
# ----------------------------------------------------------------------------
def _graph_kernel(x_ref, a_ref, wi_ref, wr_ref, b_ref, out_ref):
    xg = x_ref[...].astype(jnp.bfloat16)           # (G, N, Ct)
    g, n, _ = xg.shape
    h = jax.lax.dot_general(xg, wi_ref[...], (((2,), (0,)), ((), ())),
                            preferred_element_type=jnp.float32)    # (G, N, Cs)
    r = jax.lax.dot_general(xg, wr_ref[...], (((2,), (0,)), ((), ())),
                            preferred_element_type=jnp.float32)    # (G, N, Cs)
    a_b = jnp.broadcast_to(a_ref[...], (g, n, n))                  # bf16, tiny
    p = jax.lax.dot_general(a_b, h.astype(jnp.bfloat16),
                            (((2,), (1,)), ((0,), (0,))),
                            preferred_element_type=jnp.float32)    # (G, N, Cs)
    z = p + r + b_ref[...]
    # exact erf GELU, matching torch nn.GELU(approximate='none').
    # TODO(synk): tanh-approx GELU would route to the idle EUP slot if tolerated.
    out_ref[...] = 0.5 * z * (1.0 + jax.lax.erf(z * (1.0 / math.sqrt(2.0))))


# ----------------------------------------------------------------------------
# Kernel 3: residual add + LayerNorm over (channels, time) per sample,
#           no affine params (F.layer_norm with weight=None, bias=None).
#           tile_b samples per grid step; output aliases the graph buffer.
# ----------------------------------------------------------------------------
def _add_ln_kernel(g_ref, r_ref, out_ref):
    tile_b = g_ref.shape[0]
    for b in range(tile_b):                       # static unroll, per-sample LN
        v = g_ref[b] + r_ref[b]                   # (Cs, T) f32
        mean = jnp.mean(v)
        c = v - mean
        var = jnp.mean(c * c)
        out_ref[b] = c * jax.lax.rsqrt(var + _EPS_LN)


# ----------------------------------------------------------------------------
# pallas_call wrappers (gridded, double-buffered, megacore-parallel)
# ----------------------------------------------------------------------------
def _temporal_block(x, wflat, scale, shift, pe_t, wres, bres, *, tile_b):
    bn, cin, t_len = x.shape
    c2, kcin = wflat.shape
    ct = c2 // 2
    cs = wres.shape[0]
    return pl.pallas_call(
        _temporal_kernel,
        grid=(bn // tile_b,),
        in_specs=[
            pl.BlockSpec((tile_b, cin, t_len), lambda b: (b, 0, 0)),
            pl.BlockSpec((c2, kcin), lambda b: (0, 0)),
            pl.BlockSpec((c2, 1), lambda b: (0, 0)),
            pl.BlockSpec((c2, 1), lambda b: (0, 0)),
            pl.BlockSpec((ct, t_len), lambda b: (0, 0)),
            pl.BlockSpec((cs, cin), lambda b: (0, 0)),
            pl.BlockSpec((cs, 1), lambda b: (0, 0)),
        ],
        out_specs=(pl.BlockSpec((tile_b, ct, t_len), lambda b: (b, 0, 0)),
                   pl.BlockSpec((tile_b, cs, t_len), lambda b: (b, 0, 0))),
        out_shape=(jax.ShapeDtypeStruct((bn, ct, t_len), jnp.float32),
                   jax.ShapeDtypeStruct((bn, cs, t_len), jnp.float32)),
        scratch_shapes=[pltpu.VMEM((kcin, t_len), jnp.float32)],
        compiler_params=pltpu.CompilerParams(dimension_semantics=("parallel",)),
    )(x, wflat, scale, shift, pe_t, wres, bres)


def _graph_block(xg, a_blk, wi, wr, b, *, tile_g):
    nblocks, n, ct = xg.shape
    cs = wi.shape[1]
    return pl.pallas_call(
        _graph_kernel,
        grid=(nblocks // tile_g,),
        in_specs=[
            pl.BlockSpec((tile_g, n, ct), lambda i: (i, 0, 0)),
            pl.BlockSpec((n, n), lambda i: (0, 0)),
            pl.BlockSpec((ct, cs), lambda i: (0, 0)),
            pl.BlockSpec((ct, cs), lambda i: (0, 0)),
            pl.BlockSpec((1, cs), lambda i: (0, 0)),
        ],
        out_specs=pl.BlockSpec((tile_g, n, cs), lambda i: (i, 0, 0)),
        out_shape=jax.ShapeDtypeStruct((nblocks, n, cs), jnp.float32),
        compiler_params=pltpu.CompilerParams(dimension_semantics=("parallel",)),
    )(xg, a_blk, wi, wr, b)


def _add_layernorm(g_ncw, res_ncw, *, tile_b):
    bn, cs, t_len = g_ncw.shape
    return pl.pallas_call(
        _add_ln_kernel,
        grid=(bn // tile_b,),
        in_specs=[pl.BlockSpec((tile_b, cs, t_len), lambda b: (b, 0, 0)),
                  pl.BlockSpec((tile_b, cs, t_len), lambda b: (b, 0, 0))],
        out_specs=pl.BlockSpec((tile_b, cs, t_len), lambda b: (b, 0, 0)),
        out_shape=jax.ShapeDtypeStruct((bn, cs, t_len), jnp.float32),
        input_output_aliases={0: 0},
        compiler_params=pltpu.CompilerParams(dimension_semantics=("parallel",)),
    )(g_ncw, res_ncw)


# ----------------------------------------------------------------------------
# Glue (all jit-traceable, no host syncs)
# ----------------------------------------------------------------------------
def _normalized_adjacency(edge_index, edge_attr, num_nodes):
    # PyG gcn_norm as invoked by ARMAConv: add_self_loops=False, source->target.
    src, dst = edge_index[0], edge_index[1]
    w = edge_attr.astype(jnp.float32)
    deg = jnp.zeros((num_nodes,), jnp.float32).at[dst].add(w)
    dinv = jnp.where(deg > 0, jax.lax.rsqrt(deg), 0.0)
    norm = dinv[src] * w * dinv[dst]
    return jnp.zeros((num_nodes, num_nodes), jnp.float32).at[dst, src].add(norm)


def stconv_forward(x, edge_index, edge_attr, params, *, num_nodes):
    BN, Cin, T = x.shape
    # The module's batch_edge_offset logic (arange(0, BN*T, N).view(1, T, 1))
    # implies a single-graph batch, i.e. BN == num_nodes.
    if BN != num_nodes or (BN * T) % num_nodes != 0:
        raise ValueError("STConv assumes a single-graph batch (BN == num_nodes)")

    w_conv = params["w_conv"]                        # (2Ct, Cin, K)
    b_conv = params["b_conv"]
    gamma, beta = params["bn_gamma"], params["bn_beta"]
    rmean, rvar = params["bn_running_mean"], params["bn_running_var"]
    pe = params["pe"]                                # (1000, Ct)
    w_res, b_res = params["w_res"], params["b_res"]  # (Cs, Cin, 1), (Cs,)
    w_init, w_root = params["arma_w_init"], params["arma_w_root"]   # (Ct, Cs)
    b_arma = params["arma_bias"]                     # (Cs,)

    C2, _, K = w_conv.shape
    Ct = C2 // 2
    Cs = w_res.shape[0]

    # --- one-time weight prep (tiny) ---
    # im2col weight: wflat[o, k*Cin + c] = w_conv[o, c, k]
    wflat = jnp.transpose(w_conv, (0, 2, 1)).reshape(C2, K * Cin).astype(jnp.bfloat16)
    # Conv bias + eval-mode BatchNorm folded into per-channel scale/shift.
    scale = gamma * jax.lax.rsqrt(rvar + _EPS_BN)
    shift = beta + (b_conv - rmean) * scale
    pe_t = jnp.transpose(pe[:T], (1, 0))             # (Ct, T) == pe[:T].T
    wres = w_res[:, :, 0].astype(jnp.bfloat16)       # (Cs, Cin)

    # batch tile: a few samples per grid step, keep >= 2 steps for megacore.
    tile_b = _largest_divisor(BN, min(8, max(1, BN // 2)))

    t_ncw, res_ncw = _temporal_block(
        x, wflat, scale.reshape(C2, 1), shift.reshape(C2, 1),
        pe_t, wres, b_res.reshape(Cs, 1), tile_b=tile_b)   # (BN,Ct,T), (BN,Cs,T)

    # Row-major reshapes reproducing torch's x.view(-1, C), then grouping into
    # the block-diagonal graph batches of N consecutive node rows.
    nblocks = (BN * T) // num_nodes
    xg = t_ncw.reshape(nblocks, num_nodes, Ct)

    a_blk = _normalized_adjacency(edge_index, edge_attr, num_nodes).astype(jnp.bfloat16)

    tile_g = _largest_divisor(nblocks, min(8, max(1, nblocks // 2)))

    g = _graph_block(xg, a_blk, w_init.astype(jnp.bfloat16),
                     w_root.astype(jnp.bfloat16), b_arma.reshape(1, Cs),
                     tile_g=tile_g)                  # (nblocks, N, Cs)

    g_ncw = g.reshape(BN, Cs, T)                     # == torch x.view(BN, -1, T)
    return _add_layernorm(g_ncw, res_ncw, tile_b=tile_b)   # (BN, Cs, T)


# ----------------------------------------------------------------------------
# Pure-JAX reference (f32 everywhere) for a numerical sanity check
# ----------------------------------------------------------------------------
def _reference_forward(x, edge_index, edge_attr, params, *, num_nodes):
    BN, Cin, T = x.shape
    w_conv, b_conv = params["w_conv"], params["b_conv"]
    C2, _, K = w_conv.shape
    Ct = C2 // 2
    Cs = params["w_res"].shape[0]

    xp = jnp.pad(x, ((0, 0), (0, 0), (K - 1, 0)))
    y = b_conv[None, :, None] + sum(
        jnp.einsum("oc,bct->bot", w_conv[:, :, k], xp[:, :, k:k + T])
        for k in range(K))
    scale = params["bn_gamma"] / jnp.sqrt(params["bn_running_var"] + _EPS_BN)
    y = (y - params["bn_running_mean"][None, :, None]) * scale[None, :, None] \
        + params["bn_beta"][None, :, None]
    y = y[:, :Ct] * jax.nn.sigmoid(y[:, Ct:])
    y = y + params["pe"][:T].T[None]

    A = _normalized_adjacency(edge_index, edge_attr, num_nodes)
    nblocks = (BN * T) // num_nodes
    xg = y.reshape(nblocks, num_nodes, Ct)           # torch's x.view(-1, C) grouped
    z = (jnp.einsum("ij,gjc->gic", A, xg @ params["arma_w_init"])
         + xg @ params["arma_w_root"] + params["arma_bias"])
    g = 0.5 * z * (1.0 + jax.lax.erf(z * (1.0 / math.sqrt(2.0))))
    g = g.reshape(BN, Cs, T)

    res = jnp.einsum("oc,bct->bot", params["w_res"][:, :, 0], x) \
        + params["b_res"][None, :, None]
    v = g + res
    mean = v.mean(axis=(1, 2), keepdims=True)
    var = ((v - mean) ** 2).mean(axis=(1, 2), keepdims=True)
    return (v - mean) / jnp.sqrt(var + _EPS_LN)


# ----------------------------------------------------------------------------
# Deterministic parameter construction
# ----------------------------------------------------------------------------
def make_positional_embedding(temporal_channels, key):
    pos = jnp.arange(1000, dtype=jnp.float32)[:, None]
    div = jnp.exp(jnp.arange(0, temporal_channels, 2, dtype=jnp.float32)
                  * (-math.log(100000.0) / temporal_channels))
    pe = jnp.zeros((1000, temporal_channels), jnp.float32)
    pe = pe.at[:, 0::2].set(jnp.sin(pos * div) / 100.0)
    pe = pe.at[:, 1::2].set(jnp.cos(pos * div) / 100.0)
    # F.dropout(pe, 0.05) applied once at __init__ -- deterministic mask here.
    keep = jax.random.bernoulli(key, 0.95, pe.shape)
    return jnp.where(keep, pe / 0.95, 0.0).astype(jnp.float32)


if __name__ == "__main__":
    key = jax.random.PRNGKey(0)
    N = 8              # graph nodes; module's edge-offset cache implies batch == 1
    BN = N
    Cin, Ct, Cs, K, T = 4, 8, 8, 3, 16

    ks = jax.random.split(key, 14)
    params = {
        "w_conv": 0.2 * jax.random.normal(ks[0], (2 * Ct, Cin, K), jnp.float32),
        "b_conv": 0.1 * jax.random.normal(ks[1], (2 * Ct,), jnp.float32),
        "bn_gamma": 1.0 + 0.1 * jax.random.normal(ks[2], (2 * Ct,), jnp.float32),
        "bn_beta": 0.1 * jax.random.normal(ks[3], (2 * Ct,), jnp.float32),
        "bn_running_mean": 0.05 * jax.random.normal(ks[4], (2 * Ct,), jnp.float32),
        "bn_running_var": 1.0 + 0.1 * jax.random.uniform(ks[5], (2 * Ct,), dtype=jnp.float32),
        "w_res": 0.2 * jax.random.normal(ks[6], (Cs, Cin, 1), jnp.float32),
        "b_res": 0.1 * jax.random.normal(ks[7], (Cs,), jnp.float32),
        "arma_w_init": 0.2 * jax.random.normal(ks[8], (Ct, Cs), jnp.float32),   # ARMAConv.init_weight[0]
        "arma_w_root": 0.2 * jax.random.normal(ks[9], (Ct, Cs), jnp.float32),   # ARMAConv.root_weight[0,0]
        "arma_bias": 0.1 * jax.random.normal(ks[10], (Cs,), jnp.float32),       # ARMAConv.bias[0,0,0]
        "pe": make_positional_embedding(Ct, ks[11]),
    }

    x = jax.random.normal(ks[12], (BN, Cin, T), jnp.float32)
    # bidirectional ring graph over N nodes
    src = jnp.arange(N, dtype=jnp.int32)
    dst = (src + 1) % N
    edge_index = jnp.concatenate(
        [jnp.stack([src, dst]), jnp.stack([dst, src])], axis=1)   # (2, 2N)
    edge_attr = 0.5 + jax.random.uniform(ks[13], (edge_index.shape[1],),
                                         dtype=jnp.float32)

    fwd = jax.jit(stconv_forward, static_argnames=("num_nodes",))
    out = jax.block_until_ready(fwd(x, edge_index, edge_attr, params, num_nodes=N))
    ref = jax.block_until_ready(
        _reference_forward(x, edge_index, edge_attr, params, num_nodes=N))

    assert out.shape == (BN, Cs, T)
    assert bool(jnp.all(jnp.isfinite(out)))
    max_err = float(jnp.max(jnp.abs(out - ref)))
    assert max_err < 5e-2, f"max abs error vs reference: {max_err}"
    print("KERNEL_OK")
</pallas_src>

<mosaic_0001>
module attributes {stable_mosaic.version = 11 : i64} {
  func.func @_temporal_kernel(%arg0: i32, %arg1: memref<4x4x16xf32, #tpu.memory_space<vmem>>, %arg2: memref<16x12xbf16, #tpu.memory_space<vmem>>, %arg3: memref<16x1xf32, #tpu.memory_space<vmem>>, %arg4: memref<16x1xf32, #tpu.memory_space<vmem>>, %arg5: memref<8x16xf32, #tpu.memory_space<vmem>>, %arg6: memref<8x4xbf16, #tpu.memory_space<vmem>>, %arg7: memref<8x1xf32, #tpu.memory_space<vmem>>, %arg8: memref<4x8x16xf32, #tpu.memory_space<vmem>>, %arg9: memref<4x8x16xf32, #tpu.memory_space<vmem>>, %arg10: memref<12x16xf32, #tpu.memory_space<vmem>>) attributes {dimension_semantics = [#tpu.dimension_semantics<parallel>], iteration_bounds = array<i64: 2>, scalar_prefetch = 0 : i64, scratch_operands = 1 : i64, tpu.core_type = #tpu.core_type<tc>, window_params = [{transform_indices = @transform_0, window_bounds = array<i64: 4, 4, 16>}, {pipeline_mode = #tpu.pipeline_mode<synchronous>, transform_indices = @transform_1, window_bounds = array<i64: 16, 12>}, {pipeline_mode = #tpu.pipeline_mode<synchronous>, transform_indices = @transform_2, window_bounds = array<i64: 16, 1>}, {pipeline_mode = #tpu.pipeline_mode<synchronous>, transform_indices = @transform_3, window_bounds = array<i64: 16, 1>}, {pipeline_mode = #tpu.pipeline_mode<synchronous>, transform_indices = @transform_4, window_bounds = array<i64: 8, 16>}, {pipeline_mode = #tpu.pipeline_mode<synchronous>, transform_indices = @transform_5, window_bounds = array<i64: 8, 4>}, {pipeline_mode = #tpu.pipeline_mode<synchronous>, transform_indices = @transform_6, window_bounds = array<i64: 8, 1>}, {transform_indices = @transform_7, window_bounds = array<i64: 4, 8, 16>}, {transform_indices = @transform_8, window_bounds = array<i64: 4, 8, 16>}]} {
    %c0 = arith.constant 0 : index
    %c0_0 = arith.constant 0 : index
    %0 = vector.load %arg2[%c0, %c0_0] : memref<16x12xbf16, #tpu.memory_space<vmem>>, vector<16x12xbf16>
    %c0_1 = arith.constant 0 : index
    %c0_2 = arith.constant 0 : index
    %1 = vector.load %arg6[%c0_1, %c0_2] : memref<8x4xbf16, #tpu.memory_space<vmem>>, vector<8x4xbf16>
    %c0_3 = arith.constant 0 : index
    %c0_4 = arith.constant 0 : index
    %2 = vector.load %arg3[%c0_3, %c0_4] : memref<16x1xf32, #tpu.memory_space<vmem>>, vector<16x1xf32>
    %c0_5 = arith.constant 0 : index
    %c0_6 = arith.constant 0 : index
    %3 = vector.load %arg4[%c0_5, %c0_6] : memref<16x1xf32, #tpu.memory_space<vmem>>, vector<16x1xf32>
    %c0_7 = arith.constant 0 : index
    %c0_8 = arith.constant 0 : index
    %4 = vector.load %arg5[%c0_7, %c0_8] : memref<8x16xf32, #tpu.memory_space<vmem>>, vector<8x16xf32>
    %c0_9 = arith.constant 0 : index
    %c0_10 = arith.constant 0 : index
    %5 = vector.load %arg7[%c0_9, %c0_10] : memref<8x1xf32, #tpu.memory_space<vmem>>, vector<8x1xf32>
    %cst = arith.constant 0.000000e+00 : f32
    %6 = vector.broadcast %cst : f32 to vector<12x16xf32>
    %c0_11 = arith.constant 0 : index
    %c0_12 = arith.constant 0 : index
    %7 = vector.load %arg10[%c0_11, %c0_12] : memref<12x16xf32, #tpu.memory_space<vmem>>, vector<12x16xf32>
    tpu.vector_store %arg10[%c0_11, %c0_12], %6 {strides = array<i32>} : memref<12x16xf32, #tpu.memory_space<vmem>>, vector<12x16xf32>,
    %c0_13 = arith.constant 0 : index
    %c0_14 = arith.constant 0 : index
    %c0_15 = arith.constant 0 : index
    %8 = vector.load %arg1[%c0_13, %c0_14, %c0_15] : memref<4x4x16xf32, #tpu.memory_space<vmem>>, vector<1x4x16xf32>
    %9 = vector.shape_cast %8 : vector<1x4x16xf32> to vector<4x16xf32>
    %10 = vector.extract_strided_slice %9 {offsets = [0, 0], sizes = [4, 14], strides = [1, 1]} : vector<4x16xf32> to vector<4x14xf32>
    %c0_16 = arith.constant 0 : index
    %c2 = arith.constant 2 : index
    %11 = vector.load %arg10[%c0_16, %c2] : memref<12x16xf32, #tpu.memory_space<vmem>>, vector<4x14xf32>
    tpu.vector_store %arg10[%c0_16, %c2], %10 {strides = array<i32>} : memref<12x16xf32, #tpu.memory_space<vmem>>, vector<4x14xf32>,
    %12 = vector.extract_strided_slice %9 {offsets = [0, 0], sizes = [4, 15], strides = [1, 1]} : vector<4x16xf32> to vector<4x15xf32>
    %c4 = arith.constant 4 : index
    %c1 = arith.constant 1 : index
    %13 = vector.load %arg10[%c4, %c1] : memref<12x16xf32, #tpu.memory_space<vmem>>, vector<4x15xf32>
    tpu.vector_store %arg10[%c4, %c1], %12 {strides = array<i32>} : memref<12x16xf32, #tpu.memory_space<vmem>>, vector<4x15xf32>,
    %c8 = arith.constant 8 : index
    %c0_17 = arith.constant 0 : index
    %14 = vector.load %arg10[%c8, %c0_17] : memref<12x16xf32, #tpu.memory_space<vmem>>, vector<4x16xf32>
    tpu.vector_store %arg10[%c8, %c0_17], %9 {strides = array<i32>} : memref<12x16xf32, #tpu.memory_space<vmem>>, vector<4x16xf32>,
    %c0_18 = arith.constant 0 : index
    %c0_19 = arith.constant 0 : index
    %15 = vector.load %arg10[%c0_18, %c0_19] : memref<12x16xf32, #tpu.memory_space<vmem>>, vector<12x16xf32>
    %16 = arith.truncf %15 : vector<12x16xf32> to vector<12x16xbf16>
    %cst_20 = arith.constant dense<0.000000e+00> : vector<16x16xf32>
    %17 = tpu.matmul %0, %16, %cst_20 {dimension_numbers = #tpu.dot_dimension_numbers<[1], [0], [0], [1], [0, 0, 1, 1], [], []>} : vector<16x12xbf16>, vector<12x16xbf16>, vector<16x16xf32> -> vector<16x16xf32>
    %18 = vector.broadcast %2 : vector<16x1xf32> to vector<16x16xf32>
    %19 = arith.mulf %17, %18 : vector<16x16xf32>
    %20 = vector.broadcast %3 : vector<16x1xf32> to vector<16x16xf32>
    %21 = arith.addf %19, %20 : vector<16x16xf32>
    %22 = vector.extract_strided_slice %21 {offsets = [0, 0], sizes = [8, 16], strides = [1, 1]} : vector<16x16xf32> to vector<8x16xf32>
    %23 = vector.extract_strided_slice %21 {offsets = [8, 0], sizes = [8, 16], strides = [1, 1]} : vector<16x16xf32> to vector<8x16xf32>
    %24 = arith.negf %23 : vector<8x16xf32>
    %25 = math.exp %24 : vector<8x16xf32>
    %cst_21 = arith.constant 1.000000e+00 : f32
    %26 = vector.broadcast %cst_21 : f32 to vector<8x16xf32>
    %27 = arith.addf %26, %25 : vector<8x16xf32>
    %28 = arith.divf %26, %27 : vector<8x16xf32>
    %29 = arith.mulf %22, %28 : vector<8x16xf32>
    %30 = arith.addf %29, %4 : vector<8x16xf32>
    %c0_22 = arith.constant 0 : index
    %c0_23 = arith.constant 0 : index
    %c0_24 = arith.constant 0 : index
    %31 = vector.load %arg8[%c0_22, %c0_23, %c0_24] : memref<4x8x16xf32, #tpu.memory_space<vmem>>, vector<1x8x16xf32>
    %32 = vector.shape_cast %31 : vector<1x8x16xf32> to vector<8x16xf32>
    %33 = vector.shape_cast %30 : vector<8x16xf32> to vector<1x8x16xf32>
    tpu.vector_store %arg8[%c0_22, %c0_23, %c0_24], %33 {strides = array<i32>} : memref<4x8x16xf32, #tpu.memory_space<vmem>>, vector<1x8x16xf32>,
    %34 = arith.truncf %9 : vector<4x16xf32> to vector<4x16xbf16>
    %cst_25 = arith.constant dense<0.000000e+00> : vector<8x16xf32>
    %35 = tpu.matmul %1, %34, %cst_25 {dimension_numbers = #tpu.dot_dimension_numbers<[1], [0], [0], [1], [0, 0, 1, 1], [], []>} : vector<8x4xbf16>, vector<4x16xbf16>, vector<8x16xf32> -> vector<8x16xf32>
    %36 = vector.broadcast %5 : vector<8x1xf32> to vector<8x16xf32>
    %37 = arith.addf %35, %36 : vector<8x16xf32>
    %c0_26 = arith.constant 0 : index
    %c0_27 = arith.constant 0 : index
    %c0_28 = arith.constant 0 : index
    %38 = vector.load %arg9[%c0_26, %c0_27, %c0_28] : memref<4x8x16xf32, #tpu.memory_space<vmem>>, vector<1x8x16xf32>
    %39 = vector.shape_cast %38 : vector<1x8x16xf32> to vector<8x16xf32>
    %40 = vector.shape_cast %37 : vector<8x16xf32> to vector<1x8x16xf32>
    tpu.vector_store %arg9[%c0_26, %c0_27, %c0_28], %40 {strides = array<i32>} : memref<4x8x16xf32, #tpu.memory_space<vmem>>, vector<1x8x16xf32>,
    %c1_29 = arith.constant 1 : index
    %c0_30 = arith.constant 0 : index
    %c0_31 = arith.constant 0 : index
    %41 = vector.load %arg1[%c1_29, %c0_30, %c0_31] : memref<4x4x16xf32, #tpu.memory_space<vmem>>, vector<1x4x16xf32>
    %42 = vector.shape_cast %41 : vector<1x4x16xf32> to vector<4x16xf32>
    %43 = vector.extract_strided_slice %42 {offsets = [0, 0], sizes = [4, 14], strides = [1, 1]} : vector<4x16xf32> to vector<4x14xf32>
    %c0_32 = arith.constant 0 : index
    %c2_33 = arith.constant 2 : index
    %44 = vector.load %arg10[%c0_32, %c2_33] : memref<12x16xf32, #tpu.memory_space<vmem>>, vector<4x14xf32>
    tpu.vector_store %arg10[%c0_32, %c2_33], %43 {strides = array<i32>} : memref<12x16xf32, #tpu.memory_space<vmem>>, vector<4x14xf32>,
    %45 = vector.extract_strided_slice %42 {offsets = [0, 0], sizes = [4, 15], strides = [1, 1]} : vector<4x16xf32> to vector<4x15xf32>
    %c4_34 = arith.constant 4 : index
    %c1_35 = arith.constant 1 : index
    %46 = vector.load %arg10[%c4_34, %c1_35] : memref<12x16xf32, #tpu.memory_space<vmem>>, vector<4x15xf32>
    tpu.vector_store %arg10[%c4_34, %c1_35], %45 {strides = array<i32>} : memref<12x16xf32, #tpu.memory_space<vmem>>, vector<4x15xf32>,
    %c8_36 = arith.constant 8 : index
    %c0_37 = arith.constant 0 : index
    %47 = vector.load %arg10[%c8_36, %c0_37] : memref<12x16xf32, #tpu.memory_space<vmem>>, vector<4x16xf32>
    tpu.vector_store %arg10[%c8_36, %c0_37], %42 {strides = array<i32>} : memref<12x16xf32, #tpu.memory_space<vmem>>, vector<4x16xf32>,
    %c0_38 = arith.constant 0 : index
    %c0_39 = arith.constant 0 : index
    %48 = vector.load %arg10[%c0_38, %c0_39] : memref<12x16xf32, #tpu.memory_space<vmem>>, vector<12x16xf32>
    %49 = arith.truncf %48 : vector<12x16xf32> to vector<12x16xbf16>
    %cst_40 = arith.constant dense<0.000000e+00> : vector<16x16xf32>
    %50 = tpu.matmul %0, %49, %cst_40 {dimension_numbers = #tpu.dot_dimension_numbers<[1], [0], [0], [1], [0, 0, 1, 1], [], []>} : vector<16x12xbf16>, vector<12x16xbf16>, vector<16x16xf32> -> vector<16x16xf32>
    %51 = vector.broadcast %2 : vector<16x1xf32> to vector<16x16xf32>
    %52 = arith.mulf %50, %51 : vector<16x16xf32>
    %53 = vector.broadcast %3 : vector<16x1xf32> to vector<16x16xf32>
    %54 = arith.addf %52, %53 : vector<16x16xf32>
    %55 = vector.extract_strided_slice %54 {offsets = [0, 0], sizes = [8, 16], strides = [1, 1]} : vector<16x16xf32> to vector<8x16xf32>
    %56 = vector.extract_strided_slice %54 {offsets = [8, 0], sizes = [8, 16], strides = [1, 1]} : vector<16x16xf32> to vector<8x16xf32>
    %57 = arith.negf %56 : vector<8x16xf32>
    %58 = math.exp %57 : vector<8x16xf32>
    %cst_41 = arith.constant 1.000000e+00 : f32
    %59 = vector.broadcast %cst_41 : f32 to vector<8x16xf32>
    %60 = arith.addf %59, %58 : vector<8x16xf32>
    %61 = arith.divf %59, %60 : vector<8x16xf32>
    %62 = arith.mulf %55, %61 : vector<8x16xf32>
    %63 = arith.addf %62, %4 : vector<8x16xf32>
    %c1_42 = arith.constant 1 : index
    %c0_43 = arith.constant 0 : index
    %c0_44 = arith.constant 0 : index
    %64 = vector.load %arg8[%c1_42, %c0_43, %c0_44] : memref<4x8x16xf32, #tpu.memory_space<vmem>>, vector<1x8x16xf32>
    %65 = vector.shape_cast %64 : vector<1x8x16xf32> to vector<8x16xf32>
    %66 = vector.shape_cast %63 : vector<8x16xf32> to vector<1x8x16xf32>
    tpu.vector_store %arg8[%c1_42, %c0_43, %c0_44], %66 {strides = array<i32>} : memref<4x8x16xf32, #tpu.memory_space<vmem>>, vector<1x8x16xf32>,
    %67 = arith.truncf %42 : vector<4x16xf32> to vector<4x16xbf16>
    %cst_45 = arith.constant dense<0.000000e+00> : vector<8x16xf32>
    %68 = tpu.matmul %1, %67, %cst_45 {dimension_numbers = #tpu.dot_dimension_numbers<[1], [0], [0], [1], [0, 0, 1, 1], [], []>} : vector<8x4xbf16>, vector<4x16xbf16>, vector<8x16xf32> -> vector<8x16xf32>
    %69 = vector.broadcast %5 : vector<8x1xf32> to vector<8x16xf32>
    %70 = arith.addf %68, %69 : vector<8x16xf32>
    %c1_46 = arith.constant 1 : index
    %c0_47 = arith.constant 0 : index
    %c0_48 = arith.constant 0 : index
    %71 = vector.load %arg9[%c1_46, %c0_47, %c0_48] : memref<4x8x16xf32, #tpu.memory_space<vmem>>, vector<1x8x16xf32>
    %72 = vector.shape_cast %71 : vector<1x8x16xf32> to vector<8x16xf32>
    %73 = vector.shape_cast %70 : vector<8x16xf32> to vector<1x8x16xf32>
    tpu.vector_store %arg9[%c1_46, %c0_47, %c0_48], %73 {strides = array<i32>} : memref<4x8x16xf32, #tpu.memory_space<vmem>>, vector<1x8x16xf32>,
    %c2_49 = arith.constant 2 : index
    %c0_50 = arith.constant 0 : index
    %c0_51 = arith.constant 0 : index
    %74 = vector.load %arg1[%c2_49, %c0_50, %c0_51] : memref<4x4x16xf32, #tpu.memory_space<vmem>>, vector<1x4x16xf32>
    %75 = vector.shape_cast %74 : vector<1x4x16xf32> to vector<4x16xf32>
    %76 = vector.extract_strided_slice %75 {offsets = [0, 0], sizes = [4, 14], strides = [1, 1]} : vector<4x16xf32> to vector<4x14xf32>
    %c0_52 = arith.constant 0 : index
    %c2_53 = arith.constant 2 : index
    %77 = vector.load %arg10[%c0_52, %c2_53] : memref<12x16xf32, #tpu.memory_space<vmem>>, vector<4x14xf32>
    tpu.vector_store %arg10[%c0_52, %c2_53], %76 {strides = array<i32>} : memref<12x16xf32, #tpu.memory_space<vmem>>, vector<4x14xf32>,
    %78 = vector.extract_strided_slice %75 {offsets = [0, 0], sizes = [4, 15], strides = [1, 1]} : vector<4x16xf32> to vector<4x15xf32>
    %c4_54 = arith.constant 4 : index
    %c1_55 = arith.constant 1 : index
    %79 = vector.load %arg10[%c4_54, %c1_55] : memref<12x16xf32, #tpu.memory_space<vmem>>, vector<4x15xf32>
    tpu.vector_store %arg10[%c4_54, %c1_55], %78 {strides = array<i32>} : memref<12x16xf32, #tpu.memory_space<vmem>>, vector<4x15xf32>,
    %c8_56 = arith.constant 8 : index
    %c0_57 = arith.constant 0 : index
    %80 = vector.load %arg10[%c8_56, %c0_57] : memref<12x16xf32, #tpu.memory_space<vmem>>, vector<4x16xf32>
    tpu.vector_store %arg10[%c8_56, %c0_57], %75 {strides = array<i32>} : memref<12x16xf32, #tpu.memory_space<vmem>>, vector<4x16xf32>,
    %c0_58 = arith.constant 0 : index
    %c0_59 = arith.constant 0 : index
    %81 = vector.load %arg10[%c0_58, %c0_59] : memref<12x16xf32, #tpu.memory_space<vmem>>, vector<12x16xf32>
    %82 = arith.truncf %81 : vector<12x16xf32> to vector<12x16xbf16>
    %cst_60 = arith.constant dense<0.000000e+00> : vector<16x16xf32>
    %83 = tpu.matmul %0, %82, %cst_60 {dimension_numbers = #tpu.dot_dimension_numbers<[1], [0], [0], [1], [0, 0, 1, 1], [], []>} : vector<16x12xbf16>, vector<12x16xbf16>, vector<16x16xf32> -> vector<16x16xf32>
    %84 = vector.broadcast %2 : vector<16x1xf32> to vector<16x16xf32>
    %85 = arith.mulf %83, %84 : vector<16x16xf32>
    %86 = vector.broadcast %3 : vector<16x1xf32> to vector<16x16xf32>
    %87 = arith.addf %85, %86 : vector<16x16xf32>
    %88 = vector.extract_strided_slice %87 {offsets = [0, 0], sizes = [8, 16], strides = [1, 1]} : vector<16x16xf32> to vector<8x16xf32>
    %89 = vector.extract_strided_slice %87 {offsets = [8, 0], sizes = [8, 16], strides = [1, 1]} : vector<16x16xf32> to vector<8x16xf32>
    %90 = arith.negf %89 : vector<8x16xf32>
    %91 = math.exp %90 : vector<8x16xf32>
    %cst_61 = arith.constant 1.000000e+00 : f32
    %92 = vector.broadcast %cst_61 : f32 to vector<8x16xf32>
    %93 = arith.addf %92, %91 : vector<8x16xf32>
    %94 = arith.divf %92, %93 : vector<8x16xf32>
    %95 = arith.mulf %88, %94 : vector<8x16xf32>
    %96 = arith.addf %95, %4 : vector<8x16xf32>
    %c2_62 = arith.constant 2 : index
    %c0_63 = arith.constant 0 : index
    %c0_64 = arith.constant 0 : index
    %97 = vector.load %arg8[%c2_62, %c0_63, %c0_64] : memref<4x8x16xf32, #tpu.memory_space<vmem>>, vector<1x8x16xf32>
    %98 = vector.shape_cast %97 : vector<1x8x16xf32> to vector<8x16xf32>
    %99 = vector.shape_cast %96 : vector<8x16xf32> to vector<1x8x16xf32>
    tpu.vector_store %arg8[%c2_62, %c0_63, %c0_64], %99 {strides = array<i32>} : memref<4x8x16xf32, #tpu.memory_space<vmem>>, vector<1x8x16xf32>,
    %100 = arith.truncf %75 : vector<4x16xf32> to vector<4x16xbf16>
    %cst_65 = arith.constant dense<0.000000e+00> : vector<8x16xf32>
    %101 = tpu.matmul %1, %100, %cst_65 {dimension_numbers = #tpu.dot_dimension_numbers<[1], [0], [0], [1], [0, 0, 1, 1], [], []>} : vector<8x4xbf16>, vector<4x16xbf16>, vector<8x16xf32> -> vector<8x16xf32>
    %102 = vector.broadcast %5 : vector<8x1xf32> to vector<8x16xf32>
    %103 = arith.addf %101, %102 : vector<8x16xf32>
    %c2_66 = arith.constant 2 : index
    %c0_67 = arith.constant 0 : index
    %c0_68 = arith.constant 0 : index
    %104 = vector.load %arg9[%c2_66, %c0_67, %c0_68] : memref<4x8x16xf32, #tpu.memory_space<vmem>>, vector<1x8x16xf32>
    %105 = vector.shape_cast %104 : vector<1x8x16xf32> to vector<8x16xf32>
    %106 = vector.shape_cast %103 : vector<8x16xf32> to vector<1x8x16xf32>
    tpu.vector_store %arg9[%c2_66, %c0_67, %c0_68], %106 {strides = array<i32>} : memref<4x8x16xf32, #tpu.memory_space<vmem>>, vector<1x8x16xf32>,
    %c3 = arith.constant 3 : index
    %c0_69 = arith.constant 0 : index
    %c0_70 = arith.constant 0 : index
    %107 = vector.load %arg1[%c3, %c0_69, %c0_70] : memref<4x4x16xf32, #tpu.memory_space<vmem>>, vector<1x4x16xf32>
    %108 = vector.shape_cast %107 : vector<1x4x16xf32> to vector<4x16xf32>
    %109 = vector.extract_strided_slice %108 {offsets = [0, 0], sizes = [4, 14], strides = [1, 1]} : vector<4x16xf32> to vector<4x14xf32>
    %c0_71 = arith.constant 0 : index
    %c2_72 = arith.constant 2 : index
    %110 = vector.load %arg10[%c0_71, %c2_72] : memref<12x16xf32, #tpu.memory_space<vmem>>, vector<4x14xf32>
    tpu.vector_store %arg10[%c0_71, %c2_72], %109 {strides = array<i32>} : memref<12x16xf32, #tpu.memory_space<vmem>>, vector<4x14xf32>,
    %111 = vector.extract_strided_slice %108 {offsets = [0, 0], sizes = [4, 15], strides = [1, 1]} : vector<4x16xf32> to vector<4x15xf32>
    %c4_73 = arith.constant 4 : index
    %c1_74 = arith.constant 1 : index
    %112 = vector.load %arg10[%c4_73, %c1_74] : memref<12x16xf32, #tpu.memory_space<vmem>>, vector<4x15xf32>
    tpu.vector_store %arg10[%c4_73, %c1_74], %111 {strides = array<i32>} : memref<12x16xf32, #tpu.memory_space<vmem>>, vector<4x15xf32>,
    %c8_75 = arith.constant 8 : index
    %c0_76 = arith.constant 0 : index
    %113 = vector.load %arg10[%c8_75, %c0_76] : memref<12x16xf32, #tpu.memory_space<vmem>>, vector<4x16xf32>
    tpu.vector_store %arg10[%c8_75, %c0_76], %108 {strides = array<i32>} : memref<12x16xf32, #tpu.memory_space<vmem>>, vector<4x16xf32>,
    %c0_77 = arith.constant 0 : index
    %c0_78 = arith.constant 0 : index
    %114 = vector.load %arg10[%c0_77, %c0_78] : memref<12x16xf32, #tpu.memory_space<vmem>>, vector<12x16xf32>
    %115 = arith.truncf %114 : vector<12x16xf32> to vector<12x16xbf16>
    %cst_79 = arith.constant dense<0.000000e+00> : vector<16x16xf32>
    %116 = tpu.matmul %0, %115, %cst_79 {dimension_numbers = #tpu.dot_dimension_numbers<[1], [0], [0], [1], [0, 0, 1, 1], [], []>} : vector<16x12xbf16>, vector<12x16xbf16>, vector<16x16xf32> -> vector<16x16xf32>
    %117 = vector.broadcast %2 : vector<16x1xf32> to vector<16x16xf32>
    %118 = arith.mulf %116, %117 : vector<16x16xf32>
    %119 = vector.broadcast %3 : vector<16x1xf32> to vector<16x16xf32>
    %120 = arith.addf %118, %119 : vector<16x16xf32>
    %121 = vector.extract_strided_slice %120 {offsets = [0, 0], sizes = [8, 16], strides = [1, 1]} : vector<16x16xf32> to vector<8x16xf32>
    %122 = vector.extract_strided_slice %120 {offsets = [8, 0], sizes = [8, 16], strides = [1, 1]} : vector<16x16xf32> to vector<8x16xf32>
    %123 = arith.negf %122 : vector<8x16xf32>
    %124 = math.exp %123 : vector<8x16xf32>
    %cst_80 = arith.constant 1.000000e+00 : f32
    %125 = vector.broadcast %cst_80 : f32 to vector<8x16xf32>
    %126 = arith.addf %125, %124 : vector<8x16xf32>
    %127 = arith.divf %125, %126 : vector<8x16xf32>
    %128 = arith.mulf %121, %127 : vector<8x16xf32>
    %129 = arith.addf %128, %4 : vector<8x16xf32>
    %c3_81 = arith.constant 3 : index
    %c0_82 = arith.constant 0 : index
    %c0_83 = arith.constant 0 : index
    %130 = vector.load %arg8[%c3_81, %c0_82, %c0_83] : memref<4x8x16xf32, #tpu.memory_space<vmem>>, vector<1x8x16xf32>
    %131 = vector.shape_cast %130 : vector<1x8x16xf32> to vector<8x16xf32>
    %132 = vector.shape_cast %129 : vector<8x16xf32> to vector<1x8x16xf32>
    tpu.vector_store %arg8[%c3_81, %c0_82, %c0_83], %132 {strides = array<i32>} : memref<4x8x16xf32, #tpu.memory_space<vmem>>, vector<1x8x16xf32>,
    %133 = arith.truncf %108 : vector<4x16xf32> to vector<4x16xbf16>
    %cst_84 = arith.constant dense<0.000000e+00> : vector<8x16xf32>
    %134 = tpu.matmul %1, %133, %cst_84 {dimension_numbers = #tpu.dot_dimension_numbers<[1], [0], [0], [1], [0, 0, 1, 1], [], []>} : vector<8x4xbf16>, vector<4x16xbf16>, vector<8x16xf32> -> vector<8x16xf32>
    %135 = vector.broadcast %5 : vector<8x1xf32> to vector<8x16xf32>
    %136 = arith.addf %134, %135 : vector<8x16xf32>
    %c3_85 = arith.constant 3 : index
    %c0_86 = arith.constant 0 : index
    %c0_87 = arith.constant 0 : index
    %137 = vector.load %arg9[%c3_85, %c0_86, %c0_87] : memref<4x8x16xf32, #tpu.memory_space<vmem>>, vector<1x8x16xf32>
    %138 = vector.shape_cast %137 : vector<1x8x16xf32> to vector<8x16xf32>
    %139 = vector.shape_cast %136 : vector<8x16xf32> to vector<1x8x16xf32>
    tpu.vector_store %arg9[%c3_85, %c0_86, %c0_87], %139 {strides = array<i32>} : memref<4x8x16xf32, #tpu.memory_space<vmem>>, vector<1x8x16xf32>,
    return
  }
  func.func @transform_0(%arg0: i32) -> (i32, i32, i32) {
    %c0_i32 = arith.constant 0 : i32
    %c0_i32_0 = arith.constant 0 : i32
    %c0_i32_1 = arith.constant 0 : i32
    return %arg0, %c0_i32, %c0_i32_0 : i32, i32, i32
  }
  func.func @transform_1(%arg0: i32) -> (i32, i32) {
    %c0_i32 = arith.constant 0 : i32
    %c0_i32_0 = arith.constant 0 : i32
    %c0_i32_1 = arith.constant 0 : i32
    return %c0_i32, %c0_i32_0 : i32, i32
  }
  func.func @transform_2(%arg0: i32) -> (i32, i32) {
    %c0_i32 = arith.constant 0 : i32
    %c0_i32_0 = arith.constant 0 : i32
    %c0_i32_1 = arith.constant 0 : i32
    return %c0_i32, %c0_i32_0 : i32, i32
  }
  func.func @transform_3(%arg0: i32) -> (i32, i32) {
    %c0_i32 = arith.constant 0 : i32
    %c0_i32_0 = arith.constant 0 : i32
    %c0_i32_1 = arith.constant 0 : i32
    return %c0_i32, %c0_i32_0 : i32, i32
  }
  func.func @transform_4(%arg0: i32) -> (i32, i32) {
    %c0_i32 = arith.constant 0 : i32
    %c0_i32_0 = arith.constant 0 : i32
    %c0_i32_1 = arith.constant 0 : i32
    return %c0_i32, %c0_i32_0 : i32, i32
  }
  func.func @transform_5(%arg0: i32) -> (i32, i32) {
    %c0_i32 = arith.constant 0 : i32
    %c0_i32_0 = arith.constant 0 : i32
    %c0_i32_1 = arith.constant 0 : i32
    return %c0_i32, %c0_i32_0 : i32, i32
  }
  func.func @transform_6(%arg0: i32) -> (i32, i32) {
    %c0_i32 = arith.constant 0 : i32
    %c0_i32_0 = arith.constant 0 : i32
    %c0_i32_1 = arith.constant 0 : i32
    return %c0_i32, %c0_i32_0 : i32, i32
  }
  func.func @transform_7(%arg0: i32) -> (i32, i32, i32) {
    %c0_i32 = arith.constant 0 : i32
    %c0_i32_0 = arith.constant 0 : i32
    %c0_i32_1 = arith.constant 0 : i32
    return %arg0, %c0_i32, %c0_i32_0 : i32, i32, i32
  }
  func.func @transform_8(%arg0: i32) -> (i32, i32, i32) {
    %c0_i32 = arith.constant 0 : i32
    %c0_i32_0 = arith.constant 0 : i32
    %c0_i32_1 = arith.constant 0 : i32
    return %arg0, %c0_i32, %c0_i32_0 : i32, i32, i32
  }
}

module attributes {stable_mosaic.version = 11 : i64} {
  func.func @_graph_kernel(%arg0: i32, %arg1: memref<8x8x8xf32, #tpu.memory_space<vmem>>, %arg2: memref<8x8xbf16, #tpu.memory_space<vmem>>, %arg3: memref<8x8xbf16, #tpu.memory_space<vmem>>, %arg4: memref<8x8xbf16, #tpu.memory_space<vmem>>, %arg5: memref<1x8xf32, #tpu.memory_space<vmem>>, %arg6: memref<8x8x8xf32, #tpu.memory_space<vmem>>) attributes {dimension_semantics = [#tpu.dimension_semantics<parallel>], iteration_bounds = array<i64: 2>, scalar_prefetch = 0 : i64, scratch_operands = 0 : i64, tpu.core_type = #tpu.core_type<tc>, window_params = [{transform_indices = @transform_0, window_bounds = array<i64: 8, 8, 8>}, {pipeline_mode = #tpu.pipeline_mode<synchronous>, transform_indices = @transform_1, window_bounds = array<i64: 8, 8>}, {pipeline_mode = #tpu.pipeline_mode<synchronous>, transform_indices = @transform_2, window_bounds = array<i64: 8, 8>}, {pipeline_mode = #tpu.pipeline_mode<synchronous>, transform_indices = @transform_3, window_bounds = array<i64: 8, 8>}, {pipeline_mode = #tpu.pipeline_mode<synchronous>, transform_indices = @transform_4, window_bounds = array<i64: 1, 8>}, {transform_indices = @transform_5, window_bounds = array<i64: 8, 8, 8>}]} {
    %c0 = arith.constant 0 : index
    %c0_0 = arith.constant 0 : index
    %c0_1 = arith.constant 0 : index
    %0 = vector.load %arg1[%c0, %c0_0, %c0_1] : memref<8x8x8xf32, #tpu.memory_space<vmem>>, vector<8x8x8xf32>
    %1 = arith.truncf %0 : vector<8x8x8xf32> to vector<8x8x8xbf16>
    %c0_2 = arith.constant 0 : index
    %c0_3 = arith.constant 0 : index
    %2 = vector.load %arg3[%c0_2, %c0_3] : memref<8x8xbf16, #tpu.memory_space<vmem>>, vector<8x8xbf16>
    %cst = arith.constant dense<0.000000e+00> : vector<8x8x8xf32>
    %3 = tpu.matmul %1, %2, %cst {dimension_numbers = #tpu.dot_dimension_numbers<[2], [0], [0, 1], [1], [0, 0, 0, 1, 1, 1], [], []>} : vector<8x8x8xbf16>, vector<8x8xbf16>, vector<8x8x8xf32> -> vector<8x8x8xf32>
    %c0_4 = arith.constant 0 : index
    %c0_5 = arith.constant 0 : index
    %4 = vector.load %arg4[%c0_4, %c0_5] : memref<8x8xbf16, #tpu.memory_space<vmem>>, vector<8x8xbf16>
    %cst_6 = arith.constant dense<0.000000e+00> : vector<8x8x8xf32>
    %5 = tpu.matmul %1, %4, %cst_6 {dimension_numbers = #tpu.dot_dimension_numbers<[2], [0], [0, 1], [1], [0, 0, 0, 1, 1, 1], [], []>} : vector<8x8x8xbf16>, vector<8x8xbf16>, vector<8x8x8xf32> -> vector<8x8x8xf32>
    %c0_7 = arith.constant 0 : index
    %c0_8 = arith.constant 0 : index
    %6 = vector.load %arg2[%c0_7, %c0_8] : memref<8x8xbf16, #tpu.memory_space<vmem>>, vector<8x8xbf16>
    %7 = vector.shape_cast %6 : vector<8x8xbf16> to vector<1x8x8xbf16>
    %8 = vector.broadcast %7 : vector<1x8x8xbf16> to vector<8x8x8xbf16>
    %9 = arith.truncf %3 : vector<8x8x8xf32> to vector<8x8x8xbf16>
    %cst_9 = arith.constant dense<0.000000e+00> : vector<8x8x8xf32>
    %10 = tpu.matmul %8, %9, %cst_9 {dimension_numbers = #tpu.dot_dimension_numbers<[2], [1], [1], [2], [0, 0, 0, 1, 1, 2], [0], [0]>} : vector<8x8x8xbf16>, vector<8x8x8xbf16>, vector<8x8x8xf32> -> vector<8x8x8xf32>
    %11 = arith.addf %10, %5 : vector<8x8x8xf32>
    %c0_10 = arith.constant 0 : index
    %c0_11 = arith.constant 0 : index
    %12 = vector.load %arg5[%c0_10, %c0_11] : memref<1x8xf32, #tpu.memory_space<vmem>>, vector<1x8xf32>
    %13 = vector.shape_cast %12 : vector<1x8xf32> to vector<1x1x8xf32>
    %14 = vector.broadcast %13 : vector<1x1x8xf32> to vector<8x8x8xf32>
    %15 = arith.addf %11, %14 : vector<8x8x8xf32>
    %cst_12 = arith.constant 5.000000e-01 : f32
    %16 = vector.broadcast %cst_12 : f32 to vector<8x8x8xf32>
    %17 = arith.mulf %16, %15 : vector<8x8x8xf32>
    %cst_13 = arith.constant 0.707106769 : f32
    %18 = vector.broadcast %cst_13 : f32 to vector<8x8x8xf32>
    %19 = arith.mulf %15, %18 : vector<8x8x8xf32>
    %20 = math.erf %19 : vector<8x8x8xf32>
    %cst_14 = arith.constant 1.000000e+00 : f32
    %21 = vector.broadcast %cst_14 : f32 to vector<8x8x8xf32>
    %22 = arith.addf %21, %20 : vector<8x8x8xf32>
    %23 = arith.mulf %17, %22 : vector<8x8x8xf32>
    %c0_15 = arith.constant 0 : index
    %c0_16 = arith.constant 0 : index
    %c0_17 = arith.constant 0 : index
    %24 = vector.load %arg6[%c0_15, %c0_16, %c0_17] : memref<8x8x8xf32, #tpu.memory_space<vmem>>, vector<8x8x8xf32>
    tpu.vector_store %arg6[%c0_15, %c0_16, %c0_17], %23 {strides = array<i32>} : memref<8x8x8xf32, #tpu.memory_space<vmem>>, vector<8x8x8xf32>,
    return
  }
  func.func @transform_0(%arg0: i32) -> (i32, i32, i32) {
    %c0_i32 = arith.constant 0 : i32
    %c0_i32_0 = arith.constant 0 : i32
    %c0_i32_1 = arith.constant 0 : i32
    return %arg0, %c0_i32, %c0_i32_0 : i32, i32, i32
  }
  func.func @transform_1(%arg0: i32) -> (i32, i32) {
    %c0_i32 = arith.constant 0 : i32
    %c0_i32_0 = arith.constant 0 : i32
    %c0_i32_1 = arith.constant 0 : i32
    return %c0_i32, %c0_i32_0 : i32, i32
  }
  func.func @transform_2(%arg0: i32) -> (i32, i32) {
    %c0_i32 = arith.constant 0 : i32
    %c0_i32_0 = arith.constant 0 : i32
    %c0_i32_1 = arith.constant 0 : i32
    return %c0_i32, %c0_i32_0 : i32, i32
  }
  func.func @transform_3(%arg0: i32) -> (i32, i32) {
    %c0_i32 = arith.constant 0 : i32
    %c0_i32_0 = arith.constant 0 : i32
    %c0_i32_1 = arith.constant 0 : i32
    return %c0_i32, %c0_i32_0 : i32, i32
  }
  func.func @transform_4(%arg0: i32) -> (i32, i32) {
    %c0_i32 = arith.constant 0 : i32
    %c0_i32_0 = arith.constant 0 : i32
    %c0_i32_1 = arith.constant 0 : i32
    return %c0_i32, %c0_i32_0 : i32, i32
  }
  func.func @transform_5(%arg0: i32) -> (i32, i32, i32) {
    %c0_i32 = arith.constant 0 : i32
    %c0_i32_0 = arith.constant 0 : i32
    %c0_i32_1 = arith.constant 0 : i32
    return %arg0, %c0_i32, %c0_i32_0 : i32, i32, i32
  }
}

module attributes {stable_mosaic.version = 11 : i64} {
  func.func @_add_ln_kernel(%arg0: i32, %arg1: memref<4x8x16xf32, #tpu.memory_space<vmem>>, %arg2: memref<4x8x16xf32, #tpu.memory_space<vmem>>, %arg3: memref<4x8x16xf32, #tpu.memory_space<vmem>>) attributes {dimension_semantics = [#tpu.dimension_semantics<parallel>], iteration_bounds = array<i64: 2>, scalar_prefetch = 0 : i64, scratch_operands = 0 : i64, tpu.core_type = #tpu.core_type<tc>, window_params = [{transform_indices = @transform_0, window_bounds = array<i64: 4, 8, 16>}, {transform_indices = @transform_1, window_bounds = array<i64: 4, 8, 16>}, {transform_indices = @transform_2, window_bounds = array<i64: 4, 8, 16>}]} {
    %c0 = arith.constant 0 : index
    %c0_0 = arith.constant 0 : index
    %c0_1 = arith.constant 0 : index
    %0 = vector.load %arg1[%c0, %c0_0, %c0_1] : memref<4x8x16xf32, #tpu.memory_space<vmem>>, vector<1x8x16xf32>
    %1 = vector.shape_cast %0 : vector<1x8x16xf32> to vector<8x16xf32>
    %c0_2 = arith.constant 0 : index
    %c0_3 = arith.constant 0 : index
    %c0_4 = arith.constant 0 : index
    %2 = vector.load %arg2[%c0_2, %c0_3, %c0_4] : memref<4x8x16xf32, #tpu.memory_space<vmem>>, vector<1x8x16xf32>
    %3 = vector.shape_cast %2 : vector<1x8x16xf32> to vector<8x16xf32>
    %4 = arith.addf %1, %3 : vector<8x16xf32>
    %5 = vector.shape_cast %4 : vector<8x16xf32> to vector<1x8x16xf32>
    %cst = arith.constant dense<0.000000e+00> : vector<1xf32>
    %6 = vector.multi_reduction <add>, %5, %cst [1, 2] : vector<1x8x16xf32> to vector<1xf32>
    %7 = vector.shape_cast %6 : vector<1xf32> to vector<1x1x1xf32>
    %8 = vector.extract %7[0, 0, 0] : f32 from vector<1x1x1xf32>
    %cst_5 = arith.constant 1.280000e+02 : f32
    %9 = arith.divf %8, %cst_5 : f32
    %10 = vector.broadcast %9 : f32 to vector<8x16xf32>
    %11 = arith.subf %4, %10 : vector<8x16xf32>
    %12 = arith.mulf %11, %11 : vector<8x16xf32>
    %13 = vector.shape_cast %12 : vector<8x16xf32> to vector<1x8x16xf32>
    %cst_6 = arith.constant dense<0.000000e+00> : vector<1xf32>
    %14 = vector.multi_reduction <add>, %13, %cst_6 [1, 2] : vector<1x8x16xf32> to vector<1xf32>
    %15 = vector.shape_cast %14 : vector<1xf32> to vector<1x1x1xf32>
    %16 = vector.extract %15[0, 0, 0] : f32 from vector<1x1x1xf32>
    %cst_7 = arith.constant 1.280000e+02 : f32
    %17 = arith.divf %16, %cst_7 : f32
    %cst_8 = arith.constant 9.99999974E-6 : f32
    %18 = arith.addf %17, %cst_8 : f32
    %19 = math.rsqrt %18 : f32
    %20 = vector.broadcast %19 : f32 to vector<8x16xf32>
    %21 = arith.mulf %11, %20 : vector<8x16xf32>
    %c0_9 = arith.constant 0 : index
    %c0_10 = arith.constant 0 : index
    %c0_11 = arith.constant 0 : index
    %22 = vector.load %arg3[%c0_9, %c0_10, %c0_11] : memref<4x8x16xf32, #tpu.memory_space<vmem>>, vector<1x8x16xf32>
    %23 = vector.shape_cast %22 : vector<1x8x16xf32> to vector<8x16xf32>
    %24 = vector.shape_cast %21 : vector<8x16xf32> to vector<1x8x16xf32>
    tpu.vector_store %arg3[%c0_9, %c0_10, %c0_11], %24 {strides = array<i32>} : memref<4x8x16xf32, #tpu.memory_space<vmem>>, vector<1x8x16xf32>,
    %c1 = arith.constant 1 : index
    %c0_12 = arith.constant 0 : index
    %c0_13 = arith.constant 0 : index
    %25 = vector.load %arg1[%c1, %c0_12, %c0_13] : memref<4x8x16xf32, #tpu.memory_space<vmem>>, vector<1x8x16xf32>
    %26 = vector.shape_cast %25 : vector<1x8x16xf32> to vector<8x16xf32>
    %c1_14 = arith.constant 1 : index
    %c0_15 = arith.constant 0 : index
    %c0_16 = arith.constant 0 : index
    %27 = vector.load %arg2[%c1_14, %c0_15, %c0_16] : memref<4x8x16xf32, #tpu.memory_space<vmem>>, vector<1x8x16xf32>
    %28 = vector.shape_cast %27 : vector<1x8x16xf32> to vector<8x16xf32>
    %29 = arith.addf %26, %28 : vector<8x16xf32>
    %30 = vector.shape_cast %29 : vector<8x16xf32> to vector<1x8x16xf32>
    %cst_17 = arith.constant dense<0.000000e+00> : vector<1xf32>
    %31 = vector.multi_reduction <add>, %30, %cst_17 [1, 2] : vector<1x8x16xf32> to vector<1xf32>
    %32 = vector.shape_cast %31 : vector<1xf32> to vector<1x1x1xf32>
    %33 = vector.extract %32[0, 0, 0] : f32 from vector<1x1x1xf32>
    %cst_18 = arith.constant 1.280000e+02 : f32
    %34 = arith.divf %33, %cst_18 : f32
    %35 = vector.broadcast %34 : f32 to vector<8x16xf32>
    %36 = arith.subf %29, %35 : vector<8x16xf32>
    %37 = arith.mulf %36, %36 : vector<8x16xf32>
    %38 = vector.shape_cast %37 : vector<8x16xf32> to vector<1x8x16xf32>
    %cst_19 = arith.constant dense<0.000000e+00> : vector<1xf32>
    %39 = vector.multi_reduction <add>, %38, %cst_19 [1, 2] : vector<1x8x16xf32> to vector<1xf32>
    %40 = vector.shape_cast %39 : vector<1xf32> to vector<1x1x1xf32>
    %41 = vector.extract %40[0, 0, 0] : f32 from vector<1x1x1xf32>
    %cst_20 = arith.constant 1.280000e+02 : f32
    %42 = arith.divf %41, %cst_20 : f32
    %cst_21 = arith.constant 9.99999974E-6 : f32
    %43 = arith.addf %42, %cst_21 : f32
    %44 = math.rsqrt %43 : f32
    %45 = vector.broadcast %44 : f32 to vector<8x16xf32>
    %46 = arith.mulf %36, %45 : vector<8x16xf32>
    %c1_22 = arith.constant 1 : index
    %c0_23 = arith.constant 0 : index
    %c0_24 = arith.constant 0 : index
    %47 = vector.load %arg3[%c1_22, %c0_23, %c0_24] : memref<4x8x16xf32, #tpu.memory_space<vmem>>, vector<1x8x16xf32>
    %48 = vector.shape_cast %47 : vector<1x8x16xf32> to vector<8x16xf32>
    %49 = vector.shape_cast %46 : vector<8x16xf32> to vector<1x8x16xf32>
    tpu.vector_store %arg3[%c1_22, %c0_23, %c0_24], %49 {strides = array<i32>} : memref<4x8x16xf32, #tpu.memory_space<vmem>>, vector<1x8x16xf32>,
    %c2 = arith.constant 2 : index
    %c0_25 = arith.constant 0 : index
    %c0_26 = arith.constant 0 : index
    %50 = vector.load %arg1[%c2, %c0_25, %c0_26] : memref<4x8x16xf32, #tpu.memory_space<vmem>>, vector<1x8x16xf32>
    %51 = vector.shape_cast %50 : vector<1x8x16xf32> to vector<8x16xf32>
    %c2_27 = arith.constant 2 : index
    %c0_28 = arith.constant 0 : index
    %c0_29 = arith.constant 0 : index
    %52 = vector.load %arg2[%c2_27, %c0_28, %c0_29] : memref<4x8x16xf32, #tpu.memory_space<vmem>>, vector<1x8x16xf32>
    %53 = vector.shape_cast %52 : vector<1x8x16xf32> to vector<8x16xf32>
    %54 = arith.addf %51, %53 : vector<8x16xf32>
    %55 = vector.shape_cast %54 : vector<8x16xf32> to vector<1x8x16xf32>
    %cst_30 = arith.constant dense<0.000000e+00> : vector<1xf32>
    %56 = vector.multi_reduction <add>, %55, %cst_30 [1, 2] : vector<1x8x16xf32> to vector<1xf32>
    %57 = vector.shape_cast %56 : vector<1xf32> to vector<1x1x1xf32>
    %58 = vector.extract %57[0, 0, 0] : f32 from vector<1x1x1xf32>
    %cst_31 = arith.constant 1.280000e+02 : f32
    %59 = arith.divf %58, %cst_31 : f32
    %60 = vector.broadcast %59 : f32 to vector<8x16xf32>
    %61 = arith.subf %54, %60 : vector<8x16xf32>
    %62 = arith.mulf %61, %61 : vector<8x16xf32>
    %63 = vector.shape_cast %62 : vector<8x16xf32> to vector<1x8x16xf32>
    %cst_32 = arith.constant dense<0.000000e+00> : vector<1xf32>
    %64 = vector.multi_reduction <add>, %63, %cst_32 [1, 2] : vector<1x8x16xf32> to vector<1xf32>
    %65 = vector.shape_cast %64 : vector<1xf32> to vector<1x1x1xf32>
    %66 = vector.extract %65[0, 0, 0] : f32 from vector<1x1x1xf32>
    %cst_33 = arith.constant 1.280000e+02 : f32
    %67 = arith.divf %66, %cst_33 : f32
    %cst_34 = arith.constant 9.99999974E-6 : f32
    %68 = arith.addf %67, %cst_34 : f32
    %69 = math.rsqrt %68 : f32
    %70 = vector.broadcast %69 : f32 to vector<8x16xf32>
    %71 = arith.mulf %61, %70 : vector<8x16xf32>
    %c2_35 = arith.constant 2 : index
    %c0_36 = arith.constant 0 : index
    %c0_37 = arith.constant 0 : index
    %72 = vector.load %arg3[%c2_35, %c0_36, %c0_37] : memref<4x8x16xf32, #tpu.memory_space<vmem>>, vector<1x8x16xf32>
    %73 = vector.shape_cast %72 : vector<1x8x16xf32> to vector<8x16xf32>
    %74 = vector.shape_cast %71 : vector<8x16xf32> to vector<1x8x16xf32>
    tpu.vector_store %arg3[%c2_35, %c0_36, %c0_37], %74 {strides = array<i32>} : memref<4x8x16xf32, #tpu.memory_space<vmem>>, vector<1x8x16xf32>,
    %c3 = arith.constant 3 : index
    %c0_38 = arith.constant 0 : index
    %c0_39 = arith.constant 0 : index
    %75 = vector.load %arg1[%c3, %c0_38, %c0_39] : memref<4x8x16xf32, #tpu.memory_space<vmem>>, vector<1x8x16xf32>
    %76 = vector.shape_cast %75 : vector<1x8x16xf32> to vector<8x16xf32>
    %c3_40 = arith.constant 3 : index
    %c0_41 = arith.constant 0 : index
    %c0_42 = arith.constant 0 : index
    %77 = vector.load %arg2[%c3_40, %c0_41, %c0_42] : memref<4x8x16xf32, #tpu.memory_space<vmem>>, vector<1x8x16xf32>
    %78 = vector.shape_cast %77 : vector<1x8x16xf32> to vector<8x16xf32>
    %79 = arith.addf %76, %78 : vector<8x16xf32>
    %80 = vector.shape_cast %79 : vector<8x16xf32> to vector<1x8x16xf32>
    %cst_43 = arith.constant dense<0.000000e+00> : vector<1xf32>
    %81 = vector.multi_reduction <add>, %80, %cst_43 [1, 2] : vector<1x8x16xf32> to vector<1xf32>
    %82 = vector.shape_cast %81 : vector<1xf32> to vector<1x1x1xf32>
    %83 = vector.extract %82[0, 0, 0] : f32 from vector<1x1x1xf32>
    %cst_44 = arith.constant 1.280000e+02 : f32
    %84 = arith.divf %83, %cst_44 : f32
    %85 = vector.broadcast %84 : f32 to vector<8x16xf32>
    %86 = arith.subf %79, %85 : vector<8x16xf32>
    %87 = arith.mulf %86, %86 : vector<8x16xf32>
    %88 = vector.shape_cast %87 : vector<8x16xf32> to vector<1x8x16xf32>
    %cst_45 = arith.constant dense<0.000000e+00> : vector<1xf32>
    %89 = vector.multi_reduction <add>, %88, %cst_45 [1, 2] : vector<1x8x16xf32> to vector<1xf32>
    %90 = vector.shape_cast %89 : vector<1xf32> to vector<1x1x1xf32>
    %91 = vector.extract %90[0, 0, 0] : f32 from vector<1x1x1xf32>
    %cst_46 = arith.constant 1.280000e+02 : f32
    %92 = arith.divf %91, %cst_46 : f32
    %cst_47 = arith.constant 9.99999974E-6 : f32
    %93 = arith.addf %92, %cst_47 : f32
    %94 = math.rsqrt %93 : f32
    %95 = vector.broadcast %94 : f32 to vector<8x16xf32>
    %96 = arith.mulf %86, %95 : vector<8x16xf32>
    %c3_48 = arith.constant 3 : index
    %c0_49 = arith.constant 0 : index
    %c0_50 = arith.constant 0 : index
    %97 = vector.load %arg3[%c3_48, %c0_49, %c0_50] : memref<4x8x16xf32, #tpu.memory_space<vmem>>, vector<1x8x16xf32>
    %98 = vector.shape_cast %97 : vector<1x8x16xf32> to vector<8x16xf32>
    %99 = vector.shape_cast %96 : vector<8x16xf32> to vector<1x8x16xf32>
    tpu.vector_store %arg3[%c3_48, %c0_49, %c0_50], %99 {strides = array<i32>} : memref<4x8x16xf32, #tpu.memory_space<vmem>>, vector<1x8x16xf32>,
    return
  }
  func.func @transform_0(%arg0: i32) -> (i32, i32, i32) {
    %c0_i32 = arith.constant 0 : i32
    %c0_i32_0 = arith.constant 0 : i32
    %c0_i32_1 = arith.constant 0 : i32
    return %arg0, %c0_i32, %c0_i32_0 : i32, i32, i32
  }
  func.func @transform_1(%arg0: i32) -> (i32, i32, i32) {
    %c0_i32 = arith.constant 0 : i32
    %c0_i32_0 = arith.constant 0 : i32
    %c0_i32_1 = arith.constant 0 : i32
    return %arg0, %c0_i32, %c0_i32_0 : i32, i32, i32
  }
  func.func @transform_2(%arg0: i32) -> (i32, i32, i32) {
    %c0_i32 = arith.constant 0 : i32
    %c0_i32_0 = arith.constant 0 : i32
    %c0_i32_1 = arith.constant 0 : i32
    return %arg0, %c0_i32, %c0_i32_0 : i32, i32, i32
  }
}

</mosaic_0001>

<llo_original>
// kernel: stconv_forward.5
$region0: #{stconv_forward.5}
  #allocation0 [shape = 'u32[]', space=smem, size = 0x4, offset = 0x4, fixed_abs, tag = 'smem constant byte address 0x4 - core index']
  #allocation1 [shape = 'u32[72,128]{1,0:T(1,128)}', space=vmem, size = 0x9000, scoped, tag = 'internal scratch']
  %s0 = inlined_call_operand.hbm [shape: f32[8,8,16], index: 0, kind: input, shape index: {}, may-alias: {0,2}]
  %s1 = inlined_call_operand.vmem [shape: f32[8,8,16], index: 1, kind: input, shape index: {}]
  %s2 = inlined_call_operand.hbm [shape: f32[8,8,16], index: 2, kind: output, shape index: {}, may-alias: {0,2}]
  %s3 = sld [smem:[#allocation0]]
  $region45: #{stconv_forward.5} parent=0
    _
  %s5 = ssub.s32 1, %s3
  %s6 = scalar_select 0, %s5, %s3
  $region1: #{stconv_forward.5} parent=0
    #allocation2 [shape = 'u8[32768]{0}', space=vmem, size = 0x8000, scoped, tag = 'input window, operand 0']
    #allocation3 [shape = 's32[2]{0}', space=sflag, size = 0x8, scoped, tag = 'scoped memory for stconv_forward.5']
    #allocation4 [shape = 's32[2]{0}', space=sflag, size = 0x8, scoped, tag = 'scoped memory for stconv_forward.5']
    #allocation5 [shape = 'u8[32768]{0}', space=vmem, size = 0x8000, scoped, tag = 'output window, operand 0']
    %7 = vsyncpa [#allocation3], 0
    %s8 = scalar_lea.sflag [#allocation3], 1
    %9 = vsyncpa %s8, 0
    %10 = vsyncpa [#allocation4], 0
    %s11 = scalar_lea.sflag [#allocation4], 1
    %12 = vsyncpa %s11, 0
    loop: start=0, step=1, limit=4
    $region2: #{stconv_forward.5} parent=1 // loop_pre_header
      _
    $region3: #{stconv_forward.5} parent=1 // loop_header
      %s14 = sphi 0, %s18
      %p15 = scmp.ge.s32.totalorder %s14, 4
      %s24 = sphi 0, %s26
      %s27 = sphi 0, %s24
      %s28 = sphi 0, %s27
      %s44 = sphi 0, %s28
      %s50 = sphi 0, %s52
      %s53 = sphi 0, %s50
      %s54 = sphi 0, %s53
      %s70 = sphi 0, %s54
      %s76 = sphi 0, %s78
      %s79 = sphi 0, %s76
      %s80 = sphi 0, %s79
      %s96 = sphi 0, %s80
    $region4: #{stconv_forward.5} parent=1 // loop_header_branch
      %17 = sbr.rel (%p15) target = $region8
    $region5: #{stconv_forward.5} parent=1 // loop_body
      %s19 = ssub.s32 %s14, 1
      %s20 = ssub.s32 %s14, 2
      %s21 = sadd.s32 %s14, 1
      %s22 = ssub.s32 %s14, %s21
      %p23 = scmp.eq.s32.totalorder %s22, 0
      %s25 = sadd.s32 %s24, 1
      %s26 = scalar_select %p23, %s24, %s25
      %p29 = pneg %p23
      %p30 = scmp.eq.s32.totalorder %s14, 1
      %p31 = por %p29, %p30
      %p32 = scmp.ne.s32.totalorder %s24, %s27
      %p33 = scmp.eq.s32.totalorder %s14, 0
      %p34 = por %p32, %p33
      %p35 = scmp.ne.s32.totalorder %s24, %s27
      %p36 = scmp.eq.s32.totalorder %s19, 1
      %p37 = por %p35, %p36
      %p38 = scmp.ne.s32.totalorder %s27, %s28
      %p39 = scmp.eq.s32.totalorder %s19, 0
      %p40 = por %p38, %p39
      %p41 = scmp.ne.s32.totalorder %s27, %s28
      %p42 = scmp.eq.s32.totalorder %s20, 1
      %p43 = por %p41, %p42
      %p45 = scmp.ne.s32.totalorder %s28, %s44
      %p46 = scmp.eq.s32.totalorder %s20, 0
      %p47 = por %p45, %p46
      %s48 = ssub.s32 %s14, %s21
      %p49 = scmp.eq.s32.totalorder %s48, 0
      %s51 = sadd.s32 %s50, 1
      %s52 = scalar_select %p49, %s50, %s51
      %p55 = pneg %p49
      %p56 = scmp.eq.s32.totalorder %s14, 1
      %p57 = por %p55, %p56
      %p58 = scmp.ne.s32.totalorder %s50, %s53
      %p59 = scmp.eq.s32.totalorder %s14, 0
      %p60 = por %p58, %p59
      %p61 = scmp.ne.s32.totalorder %s50, %s53
      %p62 = scmp.eq.s32.totalorder %s19, 1
      %p63 = por %p61, %p62
      %p64 = scmp.ne.s32.totalorder %s53, %s54
      %p65 = scmp.eq.s32.totalorder %s19, 0
      %p66 = por %p64, %p65
      %p67 = scmp.ne.s32.totalorder %s53, %s54
      %p68 = scmp.eq.s32.totalorder %s20, 1
      %p69 = por %p67, %p68
      %p71 = scmp.ne.s32.totalorder %s54, %s70
      %p72 = scmp.eq.s32.totalorder %s20, 0
      %p73 = por %p71, %p72
      %s74 = ssub.s32 %s14, %s21
      %p75 = scmp.eq.s32.totalorder %s74, 0
      %s77 = sadd.s32 %s76, 1
      %s78 = scalar_select %p75, %s76, %s77
      %p81 = pneg %p75
      %p82 = scmp.eq.s32.totalorder %s14, 1
      %p83 = por %p81, %p82
      %p84 = scmp.ne.s32.totalorder %s76, %s79
      %p85 = scmp.eq.s32.totalorder %s14, 0
      %p86 = por %p84, %p85
      %p87 = scmp.ne.s32.totalorder %s76, %s79
      %p88 = scmp.eq.s32.totalorder %s19, 1
      %p89 = por %p87, %p88
      %p90 = scmp.ne.s32.totalorder %s79, %s80
      %p91 = scmp.eq.s32.totalorder %s19, 0
      %p92 = por %p90, %p91
      %p93 = scmp.ne.s32.totalorder %s79, %s80
      %p94 = scmp.eq.s32.totalorder %s20, 1
      %p95 = por %p93, %p94
      %p97 = scmp.ne.s32.totalorder %s80, %s96
      %p98 = scmp.eq.s32.totalorder %s20, 0
      %p99 = por %p97, %p98
      %p100 = scmp.le.s32.totalorder 1, %s14
      %p101 = scmp.lt.s32.totalorder %s14, 3
      %p102 = pnand %p100, %p101
      %p103 = pneg %p102
      // Predicated region
      $region9: #{stconv_forward.5} parent=5 // pred_check
        _
      $region10: #{stconv_forward.5} parent=5 // pred_check_branch
        %105 = sbr.rel (%p102) target = $region12
      $region11: #{stconv_forward.5} parent=5 // pred_region
        %s106 = ssub.s32 %s14, 1
      $region12: #{stconv_forward.5} parent=5 // pred_fallthru
        _
      %p107 = scmp.lt.s32.totalorder %s14, 2
      // Predicated region
      $region13: #{stconv_forward.5} parent=5 // pred_check
        %p108 = pneg %p107
      $region14: #{stconv_forward.5} parent=5 // pred_check_branch
        %110 = sbr.rel (%p108) target = $region16
      $region15: #{stconv_forward.5} parent=5 // pred_region
        // Predicated region
        $region17: #{stconv_forward.5} parent=15 // pred_check
          %p111 = pneg %p34
        $region18: #{stconv_forward.5} parent=15 // pred_check_branch
          %113 = sbr.rel (%p111) target = $region20
        $region19: #{stconv_forward.5} parent=15 // pred_region
          %s114 = sand.u32 %s24, 1
          %s115 = scalar_lea.sflag [#allocation3], %s114
          %s116 = sand.u32 %s24, 1
          %s117 = smul.addr %s116, 32
          %s118 = scalar_lea.vmem [#allocation2], %s117
          %s119 = smul.u32 4, %s14
          %121 = vsyncadd %s115, 0
          %s122 = smul.addr %s119, 8
          %s123 = scalar_lea.hbm %s0, %s122
          %s124 = sshll.u32 %s123, 4
          %s125 = int_to_ptr.hbm [resolvable:$true] %s124
          %s126 = sshll.u32 %s118, 4
          %s127 = int_to_ptr.vmem [resolvable:$true] %s126
          %132 = dma.hbm_to_vmem [thread:$0]  %s125, 512, %s127, %s115, 128, 128, 8
        $region20: #{stconv_forward.5} parent=15 // pred_fallthru
          _
        // Predicated region
        $region21: #{stconv_forward.5} parent=15 // pred_check
          %p133 = pneg %p60
        $region22: #{stconv_forward.5} parent=15 // pred_check_branch
          %135 = sbr.rel (%p133) target = $region24
        $region23: #{stconv_forward.5} parent=15 // pred_region
          %s136 = smul.u32 4, %s14
          %p137 = scmp.lt.s32.totalorder %s136, 7
          %s138 = scalar_select %p137, %s136, 7
          %s139 = smul.addr %s138, 8
          %s140 = scalar_lea.vmem %s1, %s139
          %s141 = smul.u32 4, %s14
        $region24: #{stconv_forward.5} parent=15 // pred_fallthru
          _
      $region16: #{stconv_forward.5} parent=5 // pred_fallthru
        _
      %p142 = scmp.le.s32.totalorder 1, %s14
      %p143 = scmp.lt.s32.totalorder %s14, 3
      %p144 = pnand %p142, %p143
      %p145 = pneg %p144
      // Predicated region
      $region25: #{stconv_forward.5} parent=5 // pred_check
        _
      $region26: #{stconv_forward.5} parent=5 // pred_check_branch
        %147 = sbr.rel (%p144) target = $region28
      $region27: #{stconv_forward.5} parent=5 // pred_region
        %s148 = ssub.s32 %s14, 1
        %s149 = sand.u32 %s27, 1
        %s150 = scalar_lea.sflag [#allocation3], %s149
        %s151 = sand.u32 %s27, 1
        %s152 = smul.addr %s151, 32
        %s153 = scalar_lea.vmem [#allocation2], %s152
        // Predicated region
        $region29: #{stconv_forward.5} parent=27 // pred_check
          %p154 = pneg %p40
        $region30: #{stconv_forward.5} parent=27 // pred_check_branch
          %156 = sbr.rel (%p154) target = $region32
        $region31: #{stconv_forward.5} parent=27 // pred_region
          %158 = dma.done %s150, 512
        $region32: #{stconv_forward.5} parent=27 // pred_fallthru
          _
        %s159 = sand.u32 %s27, 1
        %s160 = scalar_lea.sflag [#allocation3], %s159
        %s161 = sand.u32 %s27, 1
        %s162 = smul.addr %s161, 32
        %s163 = scalar_lea.vmem [#allocation2], %s162
        %p164 = pneg %p40
        %p165 = pneg %p37
        %s166 = smul.u32 4, %s19
        %p167 = scmp.lt.s32.totalorder %s166, 7
        %s168 = scalar_select %p167, %s166, 7
        %s169 = smul.addr %s168, 8
        %s170 = scalar_lea.vmem %s1, %s169
        %p171 = pneg %p66
        %p172 = pneg %p63
        %p173 = pneg %p92
        %p174 = pneg %p89
        %s175 = sand.u32 %s79, 1
        %s176 = scalar_lea.sflag [#allocation4], %s175
        %s177 = sand.u32 %s79, 1
        %s178 = smul.addr %s177, 32
        %s179 = scalar_lea.vmem [#allocation5], %s178
        %s180 = smul.u32 4, %s19
        %s181 = smul.u32 4, %s19
        %p182 = scmp.lt.s32.totalorder %s181, 7
        %s183 = scalar_select %p182, %s181, 7
        %s184 = smul.addr %s183, 8
        %s185 = scalar_lea.vmem %s1, %s184
        %s186 = smul.u32 4, %s19
        %s187 = smul.u32 4, %s19
        %v188 = vld [vmem:[%s153] sm:$0xff]
        %v189 = vld [vmem:[%s185] sm:$0xff]
        %v190 = vadd.f32 %v188, %v189
        %vm191 = vcmask 130048
        %v192 = vsel %vm191, %v190, 0.0
        %193 = vadd.xlane.f32.xlu0 %v192
        %v194 = vpop.xlane.xlu0 %193
        %v195 = vrot.slane %v194, 4
        %v196 = vadd.f32 %v194, %v195
        %v197 = vrot.slane %v196, 2
        %v198 = vadd.f32 %v196, %v197
        %v199 = vrot.slane %v198, 1
        %v200 = vadd.f32 %v198, %v199
        %s201 = vtos %v200
        %v202 = vrcp.pop 128.0
        %v203 = vmul.f32 128.0, %v202
        %v204 = vsub.f32 1.0, %v203
        %v205 = vmul.f32 %v202, %v204
        %v206 = vadd.f32 %v202, %v205
        %vm207 = vweird.f32 %v202
        %v208 = vsel %vm207, %v202, %v206
        %s209 = vtos %v208
        %s210 = smul.f32 %s201, %s209
        %v211 = vstv %s210
        %v212 = vsub.f32 %v190, %v211
        %v213 = vmul.f32 %v212, %v212
        %v214 = vsel %vm191, %v213, 0.0
        %215 = vadd.xlane.f32.xlu0 %v214
        %v216 = vpop.xlane.xlu0 %215
        %v217 = vrot.slane %v216, 4
        %v218 = vadd.f32 %v216, %v217
        %v219 = vrot.slane %v218, 2
        %v220 = vadd.f32 %v218, %v219
        %v221 = vrot.slane %v220, 1
        %v222 = vadd.f32 %v220, %v221
        %s223 = vtos %v222
        %v224 = vrcp.pop 128.0
        %v225 = vmul.f32 128.0, %v224
        %v226 = vsub.f32 1.0, %v225
        %v227 = vmul.f32 %v224, %v226
        %v228 = vadd.f32 %v224, %v227
        %vm229 = vweird.f32 %v224
        %v230 = vsel %vm229, %v224, %v228
        %s231 = vtos %v230
        %s232 = smul.f32 %s223, %s231
        %s233 = sadd.f32 %s232, 1e-05
        %v234 = vstv %s233
        %v235 = vrsqrt.pop %v234
        %v236 = vmul.f32 %v235, %v234
        %v237 = vmul.f32 %v236, %v235
        %v238 = vmul.f32 0.5, %v237
        %v239 = vsub.f32 1.5, %v238
        %v240 = vmul.f32 %v235, %v239
        %vm241 = vweird.f32 %v234
        %vm242 = vweird.f32 %v235
        %vm243 = vmor %vm241, %vm242
        %v244 = vsel %vm243, %v235, %v240
        %s245 = vtos %v244
        %v246 = vstv %s245
        %v247 = vmul.f32 %v212, %v246
        %248 = vst.msk [vmem:[%s179] sm:$0xff] %vm191, %v247
        %s249 = scalar_lea.vmem %s153, 8 [#allocation2]
        %v250 = vld [vmem:[%s249] sm:$0xff]
        %s251 = scalar_lea.vmem %s185, 8
        %v252 = vld [vmem:[%s251] sm:$0xff]
        %v253 = vadd.f32 %v250, %v252
        %v254 = vsel %vm191, %v253, 0.0
        %255 = vadd.xlane.f32.xlu0 %v254
        %v256 = vpop.xlane.xlu0 %255
        %v257 = vrot.slane %v256, 4
        %v258 = vadd.f32 %v256, %v257
        %v259 = vrot.slane %v258, 2
        %v260 = vadd.f32 %v258, %v259
        %v261 = vrot.slane %v260, 1
        %v262 = vadd.f32 %v260, %v261
        %s263 = vtos %v262
        %v264 = vrcp.pop 128.0
        %v265 = vmul.f32 128.0, %v264
        %v266 = vsub.f32 1.0, %v265
        %v267 = vmul.f32 %v264, %v266
        %v268 = vadd.f32 %v264, %v267
        %vm269 = vweird.f32 %v264
        %v270 = vsel %vm269, %v264, %v268
        %s271 = vtos %v270
        %s272 = smul.f32 %s263, %s271
        %v273 = vstv %s272
        %v274 = vsub.f32 %v253, %v273
        %v275 = vmul.f32 %v274, %v274
        %v276 = vsel %vm191, %v275, 0.0
        %277 = vadd.xlane.f32.xlu0 %v276
        %v278 = vpop.xlane.xlu0 %277
        %v279 = vrot.slane %v278, 4
        %v280 = vadd.f32 %v278, %v279
        %v281 = vrot.slane %v280, 2
        %v282 = vadd.f32 %v280, %v281
        %v283 = vrot.slane %v282, 1
        %v284 = vadd.f32 %v282, %v283
        %s285 = vtos %v284
        %v286 = vrcp.pop 128.0
        %v287 = vmul.f32 128.0, %v286
        %v288 = vsub.f32 1.0, %v287
        %v289 = vmul.f32 %v286, %v288
        %v290 = vadd.f32 %v286, %v289
        %vm291 = vweird.f32 %v286
        %v292 = vsel %vm291, %v286, %v290
        %s293 = vtos %v292
        %s294 = smul.f32 %s285, %s293
        %s295 = sadd.f32 %s294, 1e-05
        %v296 = vstv %s295
        %v297 = vrsqrt.pop %v296
        %v298 = vmul.f32 %v297, %v296
        %v299 = vmul.f32 %v298, %v297
        %v300 = vmul.f32 0.5, %v299
        %v301 = vsub.f32 1.5, %v300
        %v302 = vmul.f32 %v297, %v301
        %vm303 = vweird.f32 %v296
        %vm304 = vweird.f32 %v297
        %vm305 = vmor %vm303, %vm304
        %v306 = vsel %vm305, %v297, %v302
        %s307 = vtos %v306
        %v308 = vstv %s307
        %v309 = vmul.f32 %v274, %v308
        %s310 = scalar_lea.vmem %s179, 8 [#allocation5]
        %311 = vst.msk [vmem:[%s310] sm:$0xff] %vm191, %v309
        %s312 = scalar_lea.vmem %s153, 16 [#allocation2]
        %v313 = vld [vmem:[%s312] sm:$0xff]
        %s314 = scalar_lea.vmem %s185, 16
        %v315 = vld [vmem:[%s314] sm:$0xff]
        %v316 = vadd.f32 %v313, %v315
        %v317 = vsel %vm191, %v316, 0.0
        %318 = vadd.xlane.f32.xlu0 %v317
        %v319 = vpop.xlane.xlu0 %318
        %v320 = vrot.slane %v319, 4
        %v321 = vadd.f32 %v319, %v320
        %v322 = vrot.slane %v321, 2
        %v323 = vadd.f32 %v321, %v322
        %v324 = vrot.slane %v323, 1
        %v325 = vadd.f32 %v323, %v324
        %s326 = vtos %v325
        %v327 = vrcp.pop 128.0
        %v328 = vmul.f32 128.0, %v327
        %v329 = vsub.f32 1.0, %v328
        %v330 = vmul.f32 %v327, %v329
        %v331 = vadd.f32 %v327, %v330
        %vm332 = vweird.f32 %v327
        %v333 = vsel %vm332, %v327, %v331
        %s334 = vtos %v333
        %s335 = smul.f32 %s326, %s334
        %v336 = vstv %s335
        %v337 = vsub.f32 %v316, %v336
        %v338 = vmul.f32 %v337, %v337
        %v339 = vsel %vm191, %v338, 0.0
        %340 = vadd.xlane.f32.xlu0 %v339
        %v341 = vpop.xlane.xlu0 %340
        %v342 = vrot.slane %v341, 4
        %v343 = vadd.f32 %v341, %v342
        %v344 = vrot.slane %v343, 2
        %v345 = vadd.f32 %v343, %v344
        %v346 = vrot.slane %v345, 1
        %v347 = vadd.f32 %v345, %v346
        %s348 = vtos %v347
        %v349 = vrcp.pop 128.0
        %v350 = vmul.f32 128.0, %v349
        %v351 = vsub.f32 1.0, %v350
        %v352 = vmul.f32 %v349, %v351
        %v353 = vadd.f32 %v349, %v352
        %vm354 = vweird.f32 %v349
        %v355 = vsel %vm354, %v349, %v353
        %s356 = vtos %v355
        %s357 = smul.f32 %s348, %s356
        %s358 = sadd.f32 %s357, 1e-05
        %v359 = vstv %s358
        %v360 = vrsqrt.pop %v359
        %v361 = vmul.f32 %v360, %v359
        %v362 = vmul.f32 %v361, %v360
        %v363 = vmul.f32 0.5, %v362
        %v364 = vsub.f32 1.5, %v363
        %v365 = vmul.f32 %v360, %v364
        %vm366 = vweird.f32 %v359
        %vm367 = vweird.f32 %v360
        %vm368 = vmor %vm366, %vm367
        %v369 = vsel %vm368, %v360, %v365
        %s370 = vtos %v369
        %v371 = vstv %s370
        %v372 = vmul.f32 %v337, %v371
        %s373 = scalar_lea.vmem %s179, 16 [#allocation5]
        %374 = vst.msk [vmem:[%s373] sm:$0xff] %vm191, %v372
        %s375 = scalar_lea.vmem %s153, 24 [#allocation2]
        %v376 = vld [vmem:[%s375] sm:$0xff]
        %s377 = scalar_lea.vmem %s185, 24
        %v378 = vld [vmem:[%s377] sm:$0xff]
        %v379 = vadd.f32 %v376, %v378
        %v380 = vsel %vm191, %v379, 0.0
        %381 = vadd.xlane.f32.xlu0 %v380
        %v382 = vpop.xlane.xlu0 %381
        %v383 = vrot.slane %v382, 4
        %v384 = vadd.f32 %v382, %v383
        %v385 = vrot.slane %v384, 2
        %v386 = vadd.f32 %v384, %v385
        %v387 = vrot.slane %v386, 1
        %v388 = vadd.f32 %v386, %v387
        %s389 = vtos %v388
        %v390 = vrcp.pop 128.0
        %v391 = vmul.f32 128.0, %v390
        %v392 = vsub.f32 1.0, %v391
        %v393 = vmul.f32 %v390, %v392
        %v394 = vadd.f32 %v390, %v393
        %vm395 = vweird.f32 %v390
        %v396 = vsel %vm395, %v390, %v394
        %s397 = vtos %v396
        %s398 = smul.f32 %s389, %s397
        %v399 = vstv %s398
        %v400 = vsub.f32 %v379, %v399
        %v401 = vmul.f32 %v400, %v400
        %v402 = vsel %vm191, %v401, 0.0
        %403 = vadd.xlane.f32.xlu0 %v402
        %v404 = vpop.xlane.xlu0 %403
        %v405 = vrot.slane %v404, 4
        %v406 = vadd.f32 %v404, %v405
        %v407 = vrot.slane %v406, 2
        %v408 = vadd.f32 %v406, %v407
        %v409 = vrot.slane %v408, 1
        %v410 = vadd.f32 %v408, %v409
        %s411 = vtos %v410
        %v412 = vrcp.pop 128.0
        %v413 = vmul.f32 128.0, %v412
        %v414 = vsub.f32 1.0, %v413
        %v415 = vmul.f32 %v412, %v414
        %v416 = vadd.f32 %v412, %v415
        %vm417 = vweird.f32 %v412
        %v418 = vsel %vm417, %v412, %v416
        %s419 = vtos %v418
        %s420 = smul.f32 %s411, %s419
        %s421 = sadd.f32 %s420, 1e-05
        %v422 = vstv %s421
        %v423 = vrsqrt.pop %v422
        %v424 = vmul.f32 %v423, %v422
        %v425 = vmul.f32 %v424, %v423
        %v426 = vmul.f32 0.5, %v425
        %v427 = vsub.f32 1.5, %v426
        %v428 = vmul.f32 %v423, %v427
        %vm429 = vweird.f32 %v422
        %vm430 = vweird.f32 %v423
        %vm431 = vmor %vm429, %vm430
        %v432 = vsel %vm431, %v423, %v428
        %s433 = vtos %v432
        %v434 = vstv %s433
        %v435 = vmul.f32 %v400, %v434
        %s436 = scalar_lea.vmem %s179, 24 [#allocation5]
        %437 = vst.msk [vmem:[%s436] sm:$0xff] %vm191, %v435
        %s438 = sand.u32 %s79, 1
        %s439 = scalar_lea.sflag [#allocation4], %s438
        %s440 = sand.u32 %s79, 1
        %s441 = smul.addr %s440, 32
        %s442 = scalar_lea.vmem [#allocation5], %s441
        // Predicated region
        $region33: #{stconv_forward.5} parent=27 // pred_check
          %p443 = pneg %p89
        $region34: #{stconv_forward.5} parent=27 // pred_check_branch
          %445 = sbr.rel (%p443) target = $region36
        $region35: #{stconv_forward.5} parent=27 // pred_region
          %s446 = smul.u32 4, %s19
          %448 = vsyncadd %s439, 0
          %s449 = smul.addr %s446, 8
          %s450 = scalar_lea.hbm %s2, %s449
          %s451 = sshll.u32 %s442, 4
          %s452 = int_to_ptr.vmem [resolvable:$true] %s451
          %s453 = sshll.u32 %s450, 4
          %s454 = int_to_ptr.hbm [resolvable:$true] %s453
          %459 = dma.vmem_to_hbm [thread:$0]  %s452, 512, %s454, %s439, 128, 128, 8
        $region36: #{stconv_forward.5} parent=27 // pred_fallthru
          _
      $region28: #{stconv_forward.5} parent=5 // pred_fallthru
        _
      %p460 = scmp.le.s32.totalorder 2, %s14
      // Predicated region
      $region37: #{stconv_forward.5} parent=5 // pred_check
        %p461 = pneg %p460
      $region38: #{stconv_forward.5} parent=5 // pred_check_branch
        %463 = sbr.rel (%p461) target = $region40
      $region39: #{stconv_forward.5} parent=5 // pred_region
        %s464 = ssub.s32 %s14, 2
        // Predicated region
        $region41: #{stconv_forward.5} parent=39 // pred_check
          %p465 = pneg %p95
        $region42: #{stconv_forward.5} parent=39 // pred_check_branch
          %467 = sbr.rel (%p465) target = $region44
        $region43: #{stconv_forward.5} parent=39 // pred_region
          %s468 = sand.u32 %s80, 1
          %s469 = scalar_lea.sflag [#allocation4], %s468
          %s470 = sand.u32 %s80, 1
          %s471 = smul.addr %s470, 32
          %s472 = scalar_lea.vmem [#allocation5], %s471
          %474 = dma.done %s469, 512
        $region44: #{stconv_forward.5} parent=39 // pred_fallthru
          _
      $region40: #{stconv_forward.5} parent=5 // pred_fallthru
        _
    $region6: #{stconv_forward.5} parent=1 // loop_footer
      %s18 = sadd.s32 1, %s14
    $region7: #{stconv_forward.5} parent=1 // loop_footer_branch
      %13 = sbr.rel target = $region3
    $region8: #{stconv_forward.5} parent=1 // loop_exit
      _
    %475 = vsyncpa [#allocation3], 1
    %s476 = scalar_lea.sflag [#allocation3], 1
    %477 = vsyncpa %s476, 1
    %478 = vsyncpa [#allocation4], 1
    %s479 = scalar_lea.sflag [#allocation4], 1
    %480 = vsyncpa %s479, 1

// kernel: stconv_forward.3
$region0: #{stconv_forward.3}
  #allocation0 [shape = 'u32[]', space=smem, size = 0x4, offset = 0x4, fixed_abs, tag = 'smem constant byte address 0x4 - core index']
  #allocation1 [shape = 'u32[72,128]{1,0:T(1,128)}', space=vmem, size = 0x9000, scoped, tag = 'internal scratch']
  #allocation2 [shape = 'f32[12,16]{1,0:T(8,128)}', space=vmem, size = 0x2000, scoped, tag = 'scratch operand']
  %s0 = inlined_call_operand.vmem [shape: f32[8,4,16], index: 0, kind: input, shape index: {}]
  %s1 = inlined_call_operand.vmem [shape: bf16[16,12], index: 1, kind: input, shape index: {}]
  %s2 = inlined_call_operand.vmem [shape: f32[16,1], index: 2, kind: input, shape index: {}]
  %s3 = inlined_call_operand.vmem [shape: f32[16,1], index: 3, kind: input, shape index: {}]
  %s4 = inlined_call_operand.vmem [shape: f32[8,16], index: 4, kind: input, shape index: {}]
  %s5 = inlined_call_operand.vmem [shape: bf16[8,4], index: 5, kind: input, shape index: {}]
  %s6 = inlined_call_operand.vmem [shape: f32[8,1], index: 6, kind: input, shape index: {}]
  %s7 = inlined_call_operand.vmem [shape: f32[8,8,16], index: 7, kind: output, shape index: {0}]
  %s8 = inlined_call_operand.vmem [shape: f32[8,8,16], index: 8, kind: output, shape index: {1}]
  %9 = xla_tuple %s7, %s8
  %s10 = sld [smem:[#allocation0]]
  $region69: #{stconv_forward.3} parent=0
    _
  %s12 = ssub.s32 1, %s10
  %s13 = scalar_select 0, %s12, %s10
  loop: start=0, step=1, limit=4
  $region2: #{stconv_forward.3} parent=0 // loop_pre_header
    _
  $region3: #{stconv_forward.3} parent=0 // loop_header
    %s15 = sphi 0, %s19
    %p16 = scmp.ge.s32.totalorder %s15, 4
    %s25 = sphi 0, %s27
    %s28 = sphi 0, %s25
    %s29 = sphi 0, %s28
    %s45 = sphi 0, %s29
    %s49 = sphi 0, %s49
    %s51 = sphi 0, %s49
    %s52 = sphi 0, %s51
    %s66 = sphi 0, %s52
    %s70 = sphi 0, %s70
    %s72 = sphi 0, %s70
    %s73 = sphi 0, %s72
    %s87 = sphi 0, %s73
    %s91 = sphi 0, %s91
    %s93 = sphi 0, %s91
    %s94 = sphi 0, %s93
    %s108 = sphi 0, %s94
    %s112 = sphi 0, %s112
    %s114 = sphi 0, %s112
    %s115 = sphi 0, %s114
    %s129 = sphi 0, %s115
    %s133 = sphi 0, %s133
    %s135 = sphi 0, %s133
    %s136 = sphi 0, %s135
    %s150 = sphi 0, %s136
    %s154 = sphi 0, %s154
    %s156 = sphi 0, %s154
    %s157 = sphi 0, %s156
    %s171 = sphi 0, %s157
    %s177 = sphi 0, %s179
    %s180 = sphi 0, %s177
    %s181 = sphi 0, %s180
    %s197 = sphi 0, %s181
    %s203 = sphi 0, %s205
    %s206 = sphi 0, %s203
    %s207 = sphi 0, %s206
    %s223 = sphi 0, %s207
  $region4: #{stconv_forward.3} parent=0 // loop_header_branch
    %18 = sbr.rel (%p16) target = $region8
  $region5: #{stconv_forward.3} parent=0 // loop_body
    %s20 = ssub.s32 %s15, 1
    %s21 = ssub.s32 %s15, 2
    %s22 = sadd.s32 %s15, 1
    %s23 = ssub.s32 %s15, %s22
    %p24 = scmp.eq.s32.totalorder %s23, 0
    %s26 = sadd.s32 %s25, 1
    %s27 = scalar_select %p24, %s25, %s26
    %p30 = pneg %p24
    %p31 = scmp.eq.s32.totalorder %s15, 1
    %p32 = por %p30, %p31
    %p33 = scmp.ne.s32.totalorder %s25, %s28
    %p34 = scmp.eq.s32.totalorder %s15, 0
    %p35 = por %p33, %p34
    %p36 = scmp.ne.s32.totalorder %s25, %s28
    %p37 = scmp.eq.s32.totalorder %s20, 1
    %p38 = por %p36, %p37
    %p39 = scmp.ne.s32.totalorder %s28, %s29
    %p40 = scmp.eq.s32.totalorder %s20, 0
    %p41 = por %p39, %p40
    %p42 = scmp.ne.s32.totalorder %s28, %s29
    %p43 = scmp.eq.s32.totalorder %s21, 1
    %p44 = por %p42, %p43
    %p46 = scmp.ne.s32.totalorder %s29, %s45
    %p47 = scmp.eq.s32.totalorder %s21, 0
    %p48 = por %p46, %p47
    %s50 = sadd.s32 %s49, 1
    %p53 = scmp.eq.s32.totalorder %s15, 1
    %p54 = scmp.ne.s32.totalorder %s49, %s51
    %p55 = scmp.eq.s32.totalorder %s15, 0
    %p56 = por %p54, %p55
    %p57 = scmp.ne.s32.totalorder %s49, %s51
    %p58 = scmp.eq.s32.totalorder %s20, 1
    %p59 = por %p57, %p58
    %p60 = scmp.ne.s32.totalorder %s51, %s52
    %p61 = scmp.eq.s32.totalorder %s20, 0
    %p62 = por %p60, %p61
    %p63 = scmp.ne.s32.totalorder %s51, %s52
    %p64 = scmp.eq.s32.totalorder %s21, 1
    %p65 = por %p63, %p64
    %p67 = scmp.ne.s32.totalorder %s52, %s66
    %p68 = scmp.eq.s32.totalorder %s21, 0
    %p69 = por %p67, %p68
    %s71 = sadd.s32 %s70, 1
    %p74 = scmp.eq.s32.totalorder %s15, 1
    %p75 = scmp.ne.s32.totalorder %s70, %s72
    %p76 = scmp.eq.s32.totalorder %s15, 0
    %p77 = por %p75, %p76
    %p78 = scmp.ne.s32.totalorder %s70, %s72
    %p79 = scmp.eq.s32.totalorder %s20, 1
    %p80 = por %p78, %p79
    %p81 = scmp.ne.s32.totalorder %s72, %s73
    %p82 = scmp.eq.s32.totalorder %s20, 0
    %p83 = por %p81, %p82
    %p84 = scmp.ne.s32.totalorder %s72, %s73
    %p85 = scmp.eq.s32.totalorder %s21, 1
    %p86 = por %p84, %p85
    %p88 = scmp.ne.s32.totalorder %s73, %s87
    %p89 = scmp.eq.s32.totalorder %s21, 0
    %p90 = por %p88, %p89
    %s92 = sadd.s32 %s91, 1
    %p95 = scmp.eq.s32.totalorder %s15, 1
    %p96 = scmp.ne.s32.totalorder %s91, %s93
    %p97 = scmp.eq.s32.totalorder %s15, 0
    %p98 = por %p96, %p97
    %p99 = scmp.ne.s32.totalorder %s91, %s93
    %p100 = scmp.eq.s32.totalorder %s20, 1
    %p101 = por %p99, %p100
    %p102 = scmp.ne.s32.totalorder %s93, %s94
    %p103 = scmp.eq.s32.totalorder %s20, 0
    %p104 = por %p102, %p103
    %p105 = scmp.ne.s32.totalorder %s93, %s94
    %p106 = scmp.eq.s32.totalorder %s21, 1
    %p107 = por %p105, %p106
    %p109 = scmp.ne.s32.totalorder %s94, %s108
    %p110 = scmp.eq.s32.totalorder %s21, 0
    %p111 = por %p109, %p110
    %s113 = sadd.s32 %s112, 1
    %p116 = scmp.eq.s32.totalorder %s15, 1
    %p117 = scmp.ne.s32.totalorder %s112, %s114
    %p118 = scmp.eq.s32.totalorder %s15, 0
    %p119 = por %p117, %p118
    %p120 = scmp.ne.s32.totalorder %s112, %s114
    %p121 = scmp.eq.s32.totalorder %s20, 1
    %p122 = por %p120, %p121
    %p123 = scmp.ne.s32.totalorder %s114, %s115
    %p124 = scmp.eq.s32.totalorder %s20, 0
    %p125 = por %p123, %p124
    %p126 = scmp.ne.s32.totalorder %s114, %s115
    %p127 = scmp.eq.s32.totalorder %s21, 1
    %p128 = por %p126, %p127
    %p130 = scmp.ne.s32.totalorder %s115, %s129
    %p131 = scmp.eq.s32.totalorder %s21, 0
    %p132 = por %p130, %p131
    %s134 = sadd.s32 %s133, 1
    %p137 = scmp.eq.s32.totalorder %s15, 1
    %p138 = scmp.ne.s32.totalorder %s133, %s135
    %p139 = scmp.eq.s32.totalorder %s15, 0
    %p140 = por %p138, %p139
    %p141 = scmp.ne.s32.totalorder %s133, %s135
    %p142 = scmp.eq.s32.totalorder %s20, 1
    %p143 = por %p141, %p142
    %p144 = scmp.ne.s32.totalorder %s135, %s136
    %p145 = scmp.eq.s32.totalorder %s20, 0
    %p146 = por %p144, %p145
    %p147 = scmp.ne.s32.totalorder %s135, %s136
    %p148 = scmp.eq.s32.totalorder %s21, 1
    %p149 = por %p147, %p148
    %p151 = scmp.ne.s32.totalorder %s136, %s150
    %p152 = scmp.eq.s32.totalorder %s21, 0
    %p153 = por %p151, %p152
    %s155 = sadd.s32 %s154, 1
    %p158 = scmp.eq.s32.totalorder %s15, 1
    %p159 = scmp.ne.s32.totalorder %s154, %s156
    %p160 = scmp.eq.s32.totalorder %s15, 0
    %p161 = por %p159, %p160
    %p162 = scmp.ne.s32.totalorder %s154, %s156
    %p163 = scmp.eq.s32.totalorder %s20, 1
    %p164 = por %p162, %p163
    %p165 = scmp.ne.s32.totalorder %s156, %s157
    %p166 = scmp.eq.s32.totalorder %s20, 0
    %p167 = por %p165, %p166
    %p168 = scmp.ne.s32.totalorder %s156, %s157
    %p169 = scmp.eq.s32.totalorder %s21, 1
    %p170 = por %p168, %p169
    %p172 = scmp.ne.s32.totalorder %s157, %s171
    %p173 = scmp.eq.s32.totalorder %s21, 0
    %p174 = por %p172, %p173
    %s175 = ssub.s32 %s15, %s22
    %p176 = scmp.eq.s32.totalorder %s175, 0
    %s178 = sadd.s32 %s177, 1
    %s179 = scalar_select %p176, %s177, %s178
    %p182 = pneg %p176
    %p183 = scmp.eq.s32.totalorder %s15, 1
    %p184 = por %p182, %p183
    %p185 = scmp.ne.s32.totalorder %s177, %s180
    %p186 = scmp.eq.s32.totalorder %s15, 0
    %p187 = por %p185, %p186
    %p188 = scmp.ne.s32.totalorder %s177, %s180
    %p189 = scmp.eq.s32.totalorder %s20, 1
    %p190 = por %p188, %p189
    %p191 = scmp.ne.s32.totalorder %s180, %s181
    %p192 = scmp.eq.s32.totalorder %s20, 0
    %p193 = por %p191, %p192
    %p194 = scmp.ne.s32.totalorder %s180, %s181
    %p195 = scmp.eq.s32.totalorder %s21, 1
    %p196 = por %p194, %p195
    %p198 = scmp.ne.s32.totalorder %s181, %s197
    %p199 = scmp.eq.s32.totalorder %s21, 0
    %p200 = por %p198, %p199
    %s201 = ssub.s32 %s15, %s22
    %p202 = scmp.eq.s32.totalorder %s201, 0
    %s204 = sadd.s32 %s203, 1
    %s205 = scalar_select %p202, %s203, %s204
    %p208 = pneg %p202
    %p209 = scmp.eq.s32.totalorder %s15, 1
    %p210 = por %p208, %p209
    %p211 = scmp.ne.s32.totalorder %s203, %s206
    %p212 = scmp.eq.s32.totalorder %s15, 0
    %p213 = por %p211, %p212
    %p214 = scmp.ne.s32.totalorder %s203, %s206
    %p215 = scmp.eq.s32.totalorder %s20, 1
    %p216 = por %p214, %p215
    %p217 = scmp.ne.s32.totalorder %s206, %s207
    %p218 = scmp.eq.s32.totalorder %s20, 0
    %p219 = por %p217, %p218
    %p220 = scmp.ne.s32.totalorder %s206, %s207
    %p221 = scmp.eq.s32.totalorder %s21, 1
    %p222 = por %p220, %p221
    %p224 = scmp.ne.s32.totalorder %s207, %s223
    %p225 = scmp.eq.s32.totalorder %s21, 0
    %p226 = por %p224, %p225
    %p227 = scmp.le.s32.totalorder 1, %s15
    %p228 = scmp.lt.s32.totalorder %s15, 3
    %p229 = pnand %p227, %p228
    %p230 = pneg %p229
    // Predicated region
    $region9: #{stconv_forward.3} parent=5 // pred_check
      _
    $region10: #{stconv_forward.3} parent=5 // pred_check_branch
      %232 = sbr.rel (%p229) target = $region12
    $region11: #{stconv_forward.3} parent=5 // pred_region
      %s233 = ssub.s32 %s15, 1
      // Predicated region
      $region13: #{stconv_forward.3} parent=11 // pred_check
        %p234 = pneg %p62
      $region14: #{stconv_forward.3} parent=11 // pred_check_branch
        %236 = sbr.rel (%p234) target = $region16
      $region15: #{stconv_forward.3} parent=11 // pred_region
        _
      $region16: #{stconv_forward.3} parent=11 // pred_fallthru
        _
      // Predicated region
      $region17: #{stconv_forward.3} parent=11 // pred_check
        %p237 = pneg %p83
      $region18: #{stconv_forward.3} parent=11 // pred_check_branch
        %239 = sbr.rel (%p237) target = $region20
      $region19: #{stconv_forward.3} parent=11 // pred_region
        _
      $region20: #{stconv_forward.3} parent=11 // pred_fallthru
        _
      // Predicated region
      $region21: #{stconv_forward.3} parent=11 // pred_check
        %p240 = pneg %p104
      $region22: #{stconv_forward.3} parent=11 // pred_check_branch
        %242 = sbr.rel (%p240) target = $region24
      $region23: #{stconv_forward.3} parent=11 // pred_region
        _
      $region24: #{stconv_forward.3} parent=11 // pred_fallthru
        _
      // Predicated region
      $region25: #{stconv_forward.3} parent=11 // pred_check
        %p243 = pneg %p125
      $region26: #{stconv_forward.3} parent=11 // pred_check_branch
        %245 = sbr.rel (%p243) target = $region28
      $region27: #{stconv_forward.3} parent=11 // pred_region
        _
      $region28: #{stconv_forward.3} parent=11 // pred_fallthru
        _
      // Predicated region
      $region29: #{stconv_forward.3} parent=11 // pred_check
        %p246 = pneg %p146
      $region30: #{stconv_forward.3} parent=11 // pred_check_branch
        %248 = sbr.rel (%p246) target = $region32
      $region31: #{stconv_forward.3} parent=11 // pred_region
        _
      $region32: #{stconv_forward.3} parent=11 // pred_fallthru
        _
      // Predicated region
      $region33: #{stconv_forward.3} parent=11 // pred_check
        %p249 = pneg %p167
      $region34: #{stconv_forward.3} parent=11 // pred_check_branch
        %251 = sbr.rel (%p249) target = $region36
      $region35: #{stconv_forward.3} parent=11 // pred_region
        _
      $region36: #{stconv_forward.3} parent=11 // pred_fallthru
        _
    $region12: #{stconv_forward.3} parent=5 // pred_fallthru
      _
    %p252 = scmp.lt.s32.totalorder %s15, 2
    // Predicated region
    $region37: #{stconv_forward.3} parent=5 // pred_check
      %p253 = pneg %p252
    $region38: #{stconv_forward.3} parent=5 // pred_check_branch
      %255 = sbr.rel (%p253) target = $region40
    $region39: #{stconv_forward.3} parent=5 // pred_region
      // Predicated region
      $region41: #{stconv_forward.3} parent=39 // pred_check
        %p256 = pneg %p35
      $region42: #{stconv_forward.3} parent=39 // pred_check_branch
        %258 = sbr.rel (%p256) target = $region44
      $region43: #{stconv_forward.3} parent=39 // pred_region
        %s259 = smul.u32 4, %s15
        %p260 = scmp.lt.s32.totalorder %s259, 7
        %s261 = scalar_select %p260, %s259, 7
        %s262 = smul.addr %s261, 4
        %s263 = scalar_lea.vmem %s0, %s262
        %s264 = smul.u32 4, %s15
      $region44: #{stconv_forward.3} parent=39 // pred_fallthru
        _
    $region40: #{stconv_forward.3} parent=5 // pred_fallthru
      _
    %p265 = scmp.le.s32.totalorder 1, %s15
    %p266 = scmp.lt.s32.totalorder %s15, 3
    %p267 = pnand %p265, %p266
    %p268 = pneg %p267
    // Predicated region
    $region45: #{stconv_forward.3} parent=5 // pred_check
      _
    $region46: #{stconv_forward.3} parent=5 // pred_check_branch
      %270 = sbr.rel (%p267) target = $region48
    $region47: #{stconv_forward.3} parent=5 // pred_region
      %s271 = ssub.s32 %s15, 1
      %s272 = smul.u32 4, %s20
      %p273 = scmp.lt.s32.totalorder %s272, 7
      %s274 = scalar_select %p273, %s272, 7
      %s275 = smul.addr %s274, 4
      %s276 = scalar_lea.vmem %s0, %s275
      %p277 = pneg %p41
      %p278 = pneg %p38
      %p279 = pneg %p62
      %p280 = pneg %p59
      %p281 = pneg %p83
      %p282 = pneg %p80
      %p283 = pneg %p104
      %p284 = pneg %p101
      %p285 = pneg %p125
      %p286 = pneg %p122
      %p287 = pneg %p146
      %p288 = pneg %p143
      %p289 = pneg %p167
      %p290 = pneg %p164
      %p291 = pneg %p193
      %p292 = pneg %p190
      %s293 = smul.u32 4, %s20
      %p294 = scmp.lt.s32.totalorder %s293, 7
      %s295 = scalar_select %p294, %s293, 7
      %s296 = smul.addr %s295, 8
      %s297 = scalar_lea.vmem %s7, %s296
      %p298 = pneg %p219
      %p299 = pneg %p216
      %s300 = smul.u32 4, %s20
      %p301 = scmp.lt.s32.totalorder %s300, 7
      %s302 = scalar_select %p301, %s300, 7
      %s303 = smul.addr %s302, 8
      %s304 = scalar_lea.vmem %s8, %s303
      %s305 = smul.u32 4, %s20
      %p306 = scmp.lt.s32.totalorder %s305, 7
      %s307 = scalar_select %p306, %s305, 7
      %s308 = smul.addr %s307, 4
      %s309 = scalar_lea.vmem %s0, %s308
      %s310 = smul.u32 4, %s20
      %s311 = smul.u32 4, %s20
      %p312 = scmp.lt.s32.totalorder %s311, 7
      %s313 = scalar_select %p312, %s311, 7
      %s314 = smul.addr %s313, 8
      %s315 = scalar_lea.vmem %s7, %s314
      %s316 = smul.u32 4, %s20
      %s317 = smul.u32 4, %s20
      %p318 = scmp.lt.s32.totalorder %s317, 7
      %s319 = scalar_select %p318, %s317, 7
      %s320 = smul.addr %s319, 8
      %s321 = scalar_lea.vmem %s8, %s320
      %s322 = smul.u32 4, %s20
      %v324 = vld [vmem:[%s1] sm:$0xf]
      %v325 = vld [vmem:[%s1 + $0x4] sm:$0xf]
      %v326 = vld [vmem:[%s5] sm:$0xf]
      %v327 = vld [vmem:[%s2] sm:$0xff]
      %v328 = vld [vmem:[%s2 + $0x8] sm:$0xff]
      %v329 = vld [vmem:[%s3] sm:$0xff]
      %v330 = vld [vmem:[%s3 + $0x8] sm:$0xff]
      %v331 = vld [vmem:[%s4] sm:$0xff]
      %v332 = vld [vmem:[%s6] sm:$0xff]
      %vm333 = vcmask 130048
      %334 = vst.msk [vmem:[#allocation2] sm:$0xff] %vm333, 0.0
      %vm335 = vcmask 125952
      %336 = vst.msk [vmem:[#allocation2 + $0x8] sm:$0xf] %vm335, 0.0
      %v337 = vld [vmem:[%s309] sm:$0xf]
      %339 = vrot.lane.b32.xlu0 %v337, 2
      %v340 = vpop.permute.xlu0 %339
      %vm342 = vcmask 125968
      %343 = vst.msk [vmem:[#allocation2] sm:$0xf] %vm342, %v340
      %344 = vrot.lane.b32.xlu0 %v337, 1
      %v345 = vpop.permute.xlu0 %344
      %vm347 = vcmask 125960
      %348 = vst.msk [vmem:[#allocation2 + $0x4] sm:$0xf] %vm347, %v345
      %349 = vst.msk [vmem:[#allocation2 + $0x8] sm:$0xf] %vm335, %v337
      %v350 = vld [vmem:[#allocation2] sm:$0xff]
      %v351 = vld [vmem:[#allocation2 + $0x8] sm:$0xf]
      %v352 = vpack.c.bf16 %v351, %v350
      %v355 = vunpack.c.l.b16 %v324
      %v356 = vunpack.c.l.b16 %v325
      %v357 = vpack.c.b16 %v356, %v355
      %vm358 = vcmask 97280
      %v360 = vsel %vm358, %v357, 0
      %vm362 = vcmask 1045504
      %v364 = vsel %vm362, %v352, 0
      %366 = vmatpush.bf16.msra.mxu0 0
      %367 = vmatpush.bf16.msra.mxu0 0
      %368 = vmatpush.bf16.msra.mxu0 0
      %369 = vmatpush.bf16.msra.mxu0 0
      %370 = vmatpush.bf16.msra.mxu0 0
      %371 = vmatpush.bf16.msra.mxu0 0
      %372 = vmatpush.bf16.msra.mxu0 0
      %373 = vmatpush.bf16.msra.mxu0 %v364
      %374 = vmatmul.bf16.gmra.mxu0 %v360
      %v375 = vpop.f32.mrf.mxu0
      %v376 = vadd.f32 0.0, %v375
      %v377 = vpop.f32.mrf.mxu0
      %v378 = vadd.f32 0.0, %v377
      %379 = vdwg.mxu0
      %381 = vset.pattern.permute.xlu0 0
      %382 = vperm.xlu0 %381, %v327
      %v383 = vpop.permute.xlu0 %382
      %386 = vset.pattern.permute.xlu0 0
      %387 = vperm.xlu0 %386, %v328
      %v388 = vpop.permute.xlu0 %387
      %v390 = vmul.f32 %v376, %v383
      %v391 = vmul.f32 %v378, %v388
      %393 = vset.pattern.permute.xlu0 0
      %394 = vperm.xlu0 %393, %v329
      %v395 = vpop.permute.xlu0 %394
      %398 = vset.pattern.permute.xlu0 0
      %399 = vperm.xlu0 %398, %v330
      %v400 = vpop.permute.xlu0 %399
      %v402 = vadd.f32 %v390, %v395
      %v403 = vadd.f32 %v391, %v400
      %v404 = vxor.u32 %v403, 2147483648
      %v405 = vmul.f32 %v404, 1.442695
      %v406 = vpow.pop %v405
      %v407 = vadd.f32 %v406, 1.0
      %v408 = vrcp.pop %v407
      %v409 = vmul.f32 %v407, %v408
      %v410 = vsub.f32 1.0, %v409
      %v411 = vmul.f32 %v408, %v410
      %v412 = vadd.f32 %v408, %v411
      %vm413 = vweird.f32 %v407
      %vm414 = vweird.f32 %v408
      %vm415 = vmor %vm413, %vm414
      %v416 = vsel %vm415, %v408, %v412
      %v417 = vand.u32 2147483647, %v407
      %vm418 = vcmp.eq.f32.partialorder %v417, 8.507059e+37
      %v419 = vand.u32 %v407, 2147483648
      %v420 = vor.u32 1.1754944e-38, %v419
      %v421 = vsel %vm418, %v420, %v416
      %v422 = vmul.f32 1.0, %v421
      %v423 = vmul.f32 %v402, %v422
      %v424 = vadd.f32 %v423, %v331
      %425 = vst.msk [vmem:[%s315] sm:$0xff] %vm333, %v424
      %v426 = vpack.c.bf16 %v337, %v337
      %428 = vset.pattern.permute.xlu0 0
      %429 = vperm.xlu0 %428, %v332
      %v430 = vpop.permute.xlu0 %429
      %vm432 = vcmask 31744
      %v434 = vsel %vm432, %v326, 0
      %vm436 = vcmask 1041408
      %v438 = vsel %vm436, %v426, 0
      %440 = vmatpush.bf16.msra.mxu0 0
      %441 = vmatpush.bf16.msra.mxu0 0
      %442 = vmatpush.bf16.msra.mxu0 0
      %443 = vmatpush.bf16.msra.mxu0 0
      %444 = vmatpush.bf16.msra.mxu0 0
      %445 = vmatpush.bf16.msra.mxu0 0
      %446 = vmatpush.bf16.msra.mxu0 0
      %447 = vmatpush.bf16.msra.mxu0 %v438
      %448 = vmatmul.bf16.gmra.mxu0 %v434
      %v449 = vpop.f32.mrf.mxu0
      %v450 = vadd.f32 %v430, %v449
      %v451 = vpop.f32.mrf.mxu0
      %452 = vdwg.mxu0
      %453 = vst.msk [vmem:[%s321] sm:$0xff] %vm333, %v450
      %s454 = scalar_lea.vmem %s309, 4
      %v455 = vld [vmem:[%s454] sm:$0xf]
      %457 = vrot.lane.b32.xlu0 %v455, 2
      %v458 = vpop.permute.xlu0 %457
      %460 = vst.msk [vmem:[#allocation2] sm:$0xf] %vm342, %v458
      %461 = vrot.lane.b32.xlu0 %v455, 1
      %v462 = vpop.permute.xlu0 %461
      %464 = vst.msk [vmem:[#allocation2 + $0x4] sm:$0xf] %vm347, %v462
      %465 = vst.msk [vmem:[#allocation2 + $0x8] sm:$0xf] %vm335, %v455
      %v466 = vld [vmem:[#allocation2] sm:$0xff]
      %v467 = vld [vmem:[#allocation2 + $0x8] sm:$0xf]
      %v468 = vpack.c.bf16 %v467, %v466
      %v470 = vsel %vm362, %v468, 0
      %472 = vmatpush.bf16.msra.mxu0 0
      %473 = vmatpush.bf16.msra.mxu0 0
      %474 = vmatpush.bf16.msra.mxu0 0
      %475 = vmatpush.bf16.msra.mxu0 0
      %476 = vmatpush.bf16.msra.mxu0 0
      %477 = vmatpush.bf16.msra.mxu0 0
      %478 = vmatpush.bf16.msra.mxu0 0
      %479 = vmatpush.bf16.msra.mxu0 %v470
      %480 = vmatmul.bf16.gmra.mxu0 %v360
      %v481 = vpop.f32.mrf.mxu0
      %v482 = vadd.f32 0.0, %v481
      %v483 = vpop.f32.mrf.mxu0
      %v484 = vadd.f32 0.0, %v483
      %485 = vdwg.mxu0
      %v486 = vmul.f32 %v482, %v383
      %v487 = vmul.f32 %v484, %v388
      %v488 = vadd.f32 %v486, %v395
      %v489 = vadd.f32 %v487, %v400
      %v490 = vxor.u32 %v489, 2147483648
      %v491 = vmul.f32 %v490, 1.442695
      %v492 = vpow.pop %v491
      %v493 = vadd.f32 %v492, 1.0
      %v494 = vrcp.pop %v493
      %v495 = vmul.f32 %v493, %v494
      %v496 = vsub.f32 1.0, %v495
      %v497 = vmul.f32 %v494, %v496
      %v498 = vadd.f32 %v494, %v497
      %vm499 = vweird.f32 %v493
      %vm500 = vweird.f32 %v494
      %vm501 = vmor %vm499, %vm500
      %v502 = vsel %vm501, %v494, %v498
      %v503 = vand.u32 2147483647, %v493
      %vm504 = vcmp.eq.f32.partialorder %v503, 8.507059e+37
      %v505 = vand.u32 %v493, 2147483648
      %v506 = vor.u32 1.1754944e-38, %v505
      %v507 = vsel %vm504, %v506, %v502
      %v508 = vmul.f32 1.0, %v507
      %v509 = vmul.f32 %v488, %v508
      %v510 = vadd.f32 %v509, %v331
      %s511 = scalar_lea.vmem %s315, 8
      %512 = vst.msk [vmem:[%s511] sm:$0xff] %vm333, %v510
      %v513 = vpack.c.bf16 %v455, %v455
      %v515 = vsel %vm436, %v513, 0
      %517 = vmatpush.bf16.msra.mxu0 0
      %518 = vmatpush.bf16.msra.mxu0 0
      %519 = vmatpush.bf16.msra.mxu0 0
      %520 = vmatpush.bf16.msra.mxu0 0
      %521 = vmatpush.bf16.msra.mxu0 0
      %522 = vmatpush.bf16.msra.mxu0 0
      %523 = vmatpush.bf16.msra.mxu0 0
      %524 = vmatpush.bf16.msra.mxu0 %v515
      %525 = vmatmul.bf16.gmra.mxu0 %v434
      %v526 = vpop.f32.mrf.mxu0
      %v527 = vadd.f32 %v430, %v526
      %v528 = vpop.f32.mrf.mxu0
      %529 = vdwg.mxu0
      %s530 = scalar_lea.vmem %s321, 8
      %531 = vst.msk [vmem:[%s530] sm:$0xff] %vm333, %v527
      %s532 = scalar_lea.vmem %s309, 8
      %v533 = vld [vmem:[%s532] sm:$0xf]
      %535 = vrot.lane.b32.xlu0 %v533, 2
      %v536 = vpop.permute.xlu0 %535
      %538 = vst.msk [vmem:[#allocation2] sm:$0xf] %vm342, %v536
      %539 = vrot.lane.b32.xlu0 %v533, 1
      %v540 = vpop.permute.xlu0 %539
      %542 = vst.msk [vmem:[#allocation2 + $0x4] sm:$0xf] %vm347, %v540
      %543 = vst.msk [vmem:[#allocation2 + $0x8] sm:$0xf] %vm335, %v533
      %v544 = vld [vmem:[#allocation2] sm:$0xff]
      %v545 = vld [vmem:[#allocation2 + $0x8] sm:$0xf]
      %v546 = vpack.c.bf16 %v545, %v544
      %v548 = vsel %vm362, %v546, 0
      %550 = vmatpush.bf16.msra.mxu0 0
      %551 = vmatpush.bf16.msra.mxu0 0
      %552 = vmatpush.bf16.msra.mxu0 0
      %553 = vmatpush.bf16.msra.mxu0 0
      %554 = vmatpush.bf16.msra.mxu0 0
      %555 = vmatpush.bf16.msra.mxu0 0
      %556 = vmatpush.bf16.msra.mxu0 0
      %557 = vmatpush.bf16.msra.mxu0 %v548
      %558 = vmatmul.bf16.gmra.mxu0 %v360
      %v559 = vpop.f32.mrf.mxu0
      %v560 = vadd.f32 0.0, %v559
      %v561 = vpop.f32.mrf.mxu0
      %v562 = vadd.f32 0.0, %v561
      %563 = vdwg.mxu0
      %v564 = vmul.f32 %v560, %v383
      %v565 = vmul.f32 %v562, %v388
      %v566 = vadd.f32 %v564, %v395
      %v567 = vadd.f32 %v565, %v400
      %v568 = vxor.u32 %v567, 2147483648
      %v569 = vmul.f32 %v568, 1.442695
      %v570 = vpow.pop %v569
      %v571 = vadd.f32 %v570, 1.0
      %v572 = vrcp.pop %v571
      %v573 = vmul.f32 %v571, %v572
      %v574 = vsub.f32 1.0, %v573
      %v575 = vmul.f32 %v572, %v574
      %v576 = vadd.f32 %v572, %v575
      %vm577 = vweird.f32 %v571
      %vm578 = vweird.f32 %v572
      %vm579 = vmor %vm577, %vm578
      %v580 = vsel %vm579, %v572, %v576
      %v581 = vand.u32 2147483647, %v571
      %vm582 = vcmp.eq.f32.partialorder %v581, 8.507059e+37
      %v583 = vand.u32 %v571, 2147483648
      %v584 = vor.u32 1.1754944e-38, %v583
      %v585 = vsel %vm582, %v584, %v580
      %v586 = vmul.f32 1.0, %v585
      %v587 = vmul.f32 %v566, %v586
      %v588 = vadd.f32 %v587, %v331
      %s589 = scalar_lea.vmem %s315, 16
      %590 = vst.msk [vmem:[%s589] sm:$0xff] %vm333, %v588
      %v591 = vpack.c.bf16 %v533, %v533
      %v593 = vsel %vm436, %v591, 0
      %595 = vmatpush.bf16.msra.mxu0 0
      %596 = vmatpush.bf16.msra.mxu0 0
      %597 = vmatpush.bf16.msra.mxu0 0
      %598 = vmatpush.bf16.msra.mxu0 0
      %599 = vmatpush.bf16.msra.mxu0 0
      %600 = vmatpush.bf16.msra.mxu0 0
      %601 = vmatpush.bf16.msra.mxu0 0
      %602 = vmatpush.bf16.msra.mxu0 %v593
      %603 = vmatmul.bf16.gmra.mxu0 %v434
      %v604 = vpop.f32.mrf.mxu0
      %v605 = vadd.f32 %v430, %v604
      %v606 = vpop.f32.mrf.mxu0
      %607 = vdwg.mxu0
      %s608 = scalar_lea.vmem %s321, 16
      %609 = vst.msk [vmem:[%s608] sm:$0xff] %vm333, %v605
      %s610 = scalar_lea.vmem %s309, 12
      %v611 = vld [vmem:[%s610] sm:$0xf]
      %613 = vrot.lane.b32.xlu0 %v611, 2
      %v614 = vpop.permute.xlu0 %613
      %616 = vst.msk [vmem:[#allocation2] sm:$0xf] %vm342, %v614
      %617 = vrot.lane.b32.xlu0 %v611, 1
      %v618 = vpop.permute.xlu0 %617
      %620 = vst.msk [vmem:[#allocation2 + $0x4] sm:$0xf] %vm347, %v618
      %621 = vst.msk [vmem:[#allocation2 + $0x8] sm:$0xf] %vm335, %v611
      %v622 = vld [vmem:[#allocation2] sm:$0xff]
      %v623 = vld [vmem:[#allocation2 + $0x8] sm:$0xf]
      %v624 = vpack.c.bf16 %v623, %v622
      %v626 = vsel %vm362, %v624, 0
      %628 = vmatpush.bf16.msra.mxu0 0
      %629 = vmatpush.bf16.msra.mxu0 0
      %630 = vmatpush.bf16.msra.mxu0 0
      %631 = vmatpush.bf16.msra.mxu0 0
      %632 = vmatpush.bf16.msra.mxu0 0
      %633 = vmatpush.bf16.msra.mxu0 0
      %634 = vmatpush.bf16.msra.mxu0 0
      %635 = vmatpush.bf16.msra.mxu0 %v626
      %636 = vmatmul.bf16.gmra.mxu0 %v360
      %v637 = vpop.f32.mrf.mxu0
      %v638 = vadd.f32 0.0, %v637
      %v639 = vpop.f32.mrf.mxu0
      %v640 = vadd.f32 0.0, %v639
      %641 = vdwg.mxu0
      %v642 = vmul.f32 %v638, %v383
      %v643 = vmul.f32 %v640, %v388
      %v644 = vadd.f32 %v642, %v395
      %v645 = vadd.f32 %v643, %v400
      %v646 = vxor.u32 %v645, 2147483648
      %v647 = vmul.f32 %v646, 1.442695
      %v648 = vpow.pop %v647
      %v649 = vadd.f32 %v648, 1.0
      %v650 = vrcp.pop %v649
      %v651 = vmul.f32 %v649, %v650
      %v652 = vsub.f32 1.0, %v651
      %v653 = vmul.f32 %v650, %v652
      %v654 = vadd.f32 %v650, %v653
      %vm655 = vweird.f32 %v649
      %vm656 = vweird.f32 %v650
      %vm657 = vmor %vm655, %vm656
      %v658 = vsel %vm657, %v650, %v654
      %v659 = vand.u32 2147483647, %v649
      %vm660 = vcmp.eq.f32.partialorder %v659, 8.507059e+37
      %v661 = vand.u32 %v649, 2147483648
      %v662 = vor.u32 1.1754944e-38, %v661
      %v663 = vsel %vm660, %v662, %v658
      %v664 = vmul.f32 1.0, %v663
      %v665 = vmul.f32 %v644, %v664
      %v666 = vadd.f32 %v665, %v331
      %s667 = scalar_lea.vmem %s315, 24
      %668 = vst.msk [vmem:[%s667] sm:$0xff] %vm333, %v666
      %v669 = vpack.c.bf16 %v611, %v611
      %v671 = vsel %vm436, %v669, 0
      %673 = vmatpush.bf16.msra.mxu0 0
      %674 = vmatpush.bf16.msra.mxu0 0
      %675 = vmatpush.bf16.msra.mxu0 0
      %676 = vmatpush.bf16.msra.mxu0 0
      %677 = vmatpush.bf16.msra.mxu0 0
      %678 = vmatpush.bf16.msra.mxu0 0
      %679 = vmatpush.bf16.msra.mxu0 0
      %680 = vmatpush.bf16.msra.mxu0 %v671
      %681 = vmatmul.bf16.gmra.mxu0 %v434
      %v682 = vpop.f32.mrf.mxu0
      %v683 = vadd.f32 %v430, %v682
      %v684 = vpop.f32.mrf.mxu0
      %685 = vdwg.mxu0
      %s686 = scalar_lea.vmem %s321, 24
      %687 = vst.msk [vmem:[%s686] sm:$0xff] %vm333, %v683
      %s688 = smul.u32 4, %s20
      %p689 = scmp.lt.s32.totalorder %s688, 7
      %s690 = scalar_select %p689, %s688, 7
      %s691 = smul.addr %s690, 8
      %s692 = scalar_lea.vmem %s7, %s691
      %s693 = smul.u32 4, %s20
      %p694 = scmp.lt.s32.totalorder %s693, 7
      %s695 = scalar_select %p694, %s693, 7
      %s696 = smul.addr %s695, 8
      %s697 = scalar_lea.vmem %s8, %s696
      // Predicated region
      $region49: #{stconv_forward.3} parent=47 // pred_check
        %p698 = pneg %p190
      $region50: #{stconv_forward.3} parent=47 // pred_check_branch
        %700 = sbr.rel (%p698) target = $region52
      $region51: #{stconv_forward.3} parent=47 // pred_region
        %s701 = smul.u32 4, %s20
      $region52: #{stconv_forward.3} parent=47 // pred_fallthru
        _
      // Predicated region
      $region53: #{stconv_forward.3} parent=47 // pred_check
        %p702 = pneg %p216
      $region54: #{stconv_forward.3} parent=47 // pred_check_branch
        %704 = sbr.rel (%p702) target = $region56
      $region55: #{stconv_forward.3} parent=47 // pred_region
        %s705 = smul.u32 4, %s20
      $region56: #{stconv_forward.3} parent=47 // pred_fallthru
        _
    $region48: #{stconv_forward.3} parent=5 // pred_fallthru
      _
    %p706 = scmp.le.s32.totalorder 2, %s15
    // Predicated region
    $region57: #{stconv_forward.3} parent=5 // pred_check
      %p707 = pneg %p706
    $region58: #{stconv_forward.3} parent=5 // pred_check_branch
      %709 = sbr.rel (%p707) target = $region60
    $region59: #{stconv_forward.3} parent=5 // pred_region
      %s710 = ssub.s32 %s15, 2
      // Predicated region
      $region61: #{stconv_forward.3} parent=59 // pred_check
        %p711 = pneg %p196
      $region62: #{stconv_forward.3} parent=59 // pred_check_branch
        %713 = sbr.rel (%p711) target = $region64
      $region63: #{stconv_forward.3} parent=59 // pred_region
        %s714 = smul.u32 4, %s21
        %p715 = scmp.lt.s32.totalorder %s714, 7
        %s716 = scalar_select %p715, %s714, 7
        %s717 = smul.addr %s716, 8
        %s718 = scalar_lea.vmem %s7, %s717
      $region64: #{stconv_forward.3} parent=59 // pred_fallthru
        _
      // Predicated region
      $region65: #{stconv_forward.3} parent=59 // pred_check
        %p719 = pneg %p222
      $region66: #{stconv_forward.3} parent=59 // pred_check_branch
        %721 = sbr.rel (%p719) target = $region68
      $region67: #{stconv_forward.3} parent=59 // pred_region
        %s722 = smul.u32 4, %s21
        %p723 = scmp.lt.s32.totalorder %s722, 7
        %s724 = scalar_select %p723, %s722, 7
        %s725 = smul.addr %s724, 8
        %s726 = scalar_lea.vmem %s8, %s725
      $region68: #{stconv_forward.3} parent=59 // pred_fallthru
        _
    $region60: #{stconv_forward.3} parent=5 // pred_fallthru
      _
  $region6: #{stconv_forward.3} parent=0 // loop_footer
    %s19 = sadd.s32 1, %s15
  $region7: #{stconv_forward.3} parent=0 // loop_footer_branch
    %14 = sbr.rel target = $region3
  $region8: #{stconv_forward.3} parent=0 // loop_exit
    _

// kernel: stconv_forward.4
$region0: #{stconv_forward.4}
  #allocation0 [shape = 'u32[]', space=smem, size = 0x4, offset = 0x4, fixed_abs, tag = 'smem constant byte address 0x4 - core index']
  #allocation1 [shape = 'u32[72,128]{1,0:T(1,128)}', space=vmem, size = 0x9000, scoped, tag = 'internal scratch']
  %s0 = inlined_call_operand.vmem [shape: f32[16,8,8], index: 0, kind: input, shape index: {}]
  %s1 = inlined_call_operand.vmem [shape: bf16[8,8], index: 1, kind: input, shape index: {}]
  %s2 = inlined_call_operand.vmem [shape: bf16[8,8], index: 2, kind: input, shape index: {}]
  %s3 = inlined_call_operand.vmem [shape: bf16[8,8], index: 3, kind: input, shape index: {}]
  %s4 = inlined_call_operand.vmem [shape: f32[1,8], index: 4, kind: input, shape index: {}]
  %s5 = inlined_call_operand.vmem [shape: f32[16,8,8], index: 5, kind: output, shape index: {}]
  %s6 = sld [smem:[#allocation0]]
  $region53: #{stconv_forward.4} parent=0
    _
  %s8 = ssub.s32 1, %s6
  %s9 = scalar_select 0, %s8, %s6
  loop: start=0, step=1, limit=4
  $region2: #{stconv_forward.4} parent=0 // loop_pre_header
    _
  $region3: #{stconv_forward.4} parent=0 // loop_header
    %s11 = sphi 0, %s15
    %p12 = scmp.ge.s32.totalorder %s11, 4
    %s21 = sphi 0, %s23
    %s24 = sphi 0, %s21
    %s25 = sphi 0, %s24
    %s41 = sphi 0, %s25
    %s45 = sphi 0, %s45
    %s47 = sphi 0, %s45
    %s48 = sphi 0, %s47
    %s62 = sphi 0, %s48
    %s66 = sphi 0, %s66
    %s68 = sphi 0, %s66
    %s69 = sphi 0, %s68
    %s83 = sphi 0, %s69
    %s87 = sphi 0, %s87
    %s89 = sphi 0, %s87
    %s90 = sphi 0, %s89
    %s104 = sphi 0, %s90
    %s108 = sphi 0, %s108
    %s110 = sphi 0, %s108
    %s111 = sphi 0, %s110
    %s125 = sphi 0, %s111
    %s131 = sphi 0, %s133
    %s134 = sphi 0, %s131
    %s135 = sphi 0, %s134
    %s151 = sphi 0, %s135
  $region4: #{stconv_forward.4} parent=0 // loop_header_branch
    %14 = sbr.rel (%p12) target = $region8
  $region5: #{stconv_forward.4} parent=0 // loop_body
    %s16 = ssub.s32 %s11, 1
    %s17 = ssub.s32 %s11, 2
    %s18 = sadd.s32 %s11, 1
    %s19 = ssub.s32 %s11, %s18
    %p20 = scmp.eq.s32.totalorder %s19, 0
    %s22 = sadd.s32 %s21, 1
    %s23 = scalar_select %p20, %s21, %s22
    %p26 = pneg %p20
    %p27 = scmp.eq.s32.totalorder %s11, 1
    %p28 = por %p26, %p27
    %p29 = scmp.ne.s32.totalorder %s21, %s24
    %p30 = scmp.eq.s32.totalorder %s11, 0
    %p31 = por %p29, %p30
    %p32 = scmp.ne.s32.totalorder %s21, %s24
    %p33 = scmp.eq.s32.totalorder %s16, 1
    %p34 = por %p32, %p33
    %p35 = scmp.ne.s32.totalorder %s24, %s25
    %p36 = scmp.eq.s32.totalorder %s16, 0
    %p37 = por %p35, %p36
    %p38 = scmp.ne.s32.totalorder %s24, %s25
    %p39 = scmp.eq.s32.totalorder %s17, 1
    %p40 = por %p38, %p39
    %p42 = scmp.ne.s32.totalorder %s25, %s41
    %p43 = scmp.eq.s32.totalorder %s17, 0
    %p44 = por %p42, %p43
    %s46 = sadd.s32 %s45, 1
    %p49 = scmp.eq.s32.totalorder %s11, 1
    %p50 = scmp.ne.s32.totalorder %s45, %s47
    %p51 = scmp.eq.s32.totalorder %s11, 0
    %p52 = por %p50, %p51
    %p53 = scmp.ne.s32.totalorder %s45, %s47
    %p54 = scmp.eq.s32.totalorder %s16, 1
    %p55 = por %p53, %p54
    %p56 = scmp.ne.s32.totalorder %s47, %s48
    %p57 = scmp.eq.s32.totalorder %s16, 0
    %p58 = por %p56, %p57
    %p59 = scmp.ne.s32.totalorder %s47, %s48
    %p60 = scmp.eq.s32.totalorder %s17, 1
    %p61 = por %p59, %p60
    %p63 = scmp.ne.s32.totalorder %s48, %s62
    %p64 = scmp.eq.s32.totalorder %s17, 0
    %p65 = por %p63, %p64
    %s67 = sadd.s32 %s66, 1
    %p70 = scmp.eq.s32.totalorder %s11, 1
    %p71 = scmp.ne.s32.totalorder %s66, %s68
    %p72 = scmp.eq.s32.totalorder %s11, 0
    %p73 = por %p71, %p72
    %p74 = scmp.ne.s32.totalorder %s66, %s68
    %p75 = scmp.eq.s32.totalorder %s16, 1
    %p76 = por %p74, %p75
    %p77 = scmp.ne.s32.totalorder %s68, %s69
    %p78 = scmp.eq.s32.totalorder %s16, 0
    %p79 = por %p77, %p78
    %p80 = scmp.ne.s32.totalorder %s68, %s69
    %p81 = scmp.eq.s32.totalorder %s17, 1
    %p82 = por %p80, %p81
    %p84 = scmp.ne.s32.totalorder %s69, %s83
    %p85 = scmp.eq.s32.totalorder %s17, 0
    %p86 = por %p84, %p85
    %s88 = sadd.s32 %s87, 1
    %p91 = scmp.eq.s32.totalorder %s11, 1
    %p92 = scmp.ne.s32.totalorder %s87, %s89
    %p93 = scmp.eq.s32.totalorder %s11, 0
    %p94 = por %p92, %p93
    %p95 = scmp.ne.s32.totalorder %s87, %s89
    %p96 = scmp.eq.s32.totalorder %s16, 1
    %p97 = por %p95, %p96
    %p98 = scmp.ne.s32.totalorder %s89, %s90
    %p99 = scmp.eq.s32.totalorder %s16, 0
    %p100 = por %p98, %p99
    %p101 = scmp.ne.s32.totalorder %s89, %s90
    %p102 = scmp.eq.s32.totalorder %s17, 1
    %p103 = por %p101, %p102
    %p105 = scmp.ne.s32.totalorder %s90, %s104
    %p106 = scmp.eq.s32.totalorder %s17, 0
    %p107 = por %p105, %p106
    %s109 = sadd.s32 %s108, 1
    %p112 = scmp.eq.s32.totalorder %s11, 1
    %p113 = scmp.ne.s32.totalorder %s108, %s110
    %p114 = scmp.eq.s32.totalorder %s11, 0
    %p115 = por %p113, %p114
    %p116 = scmp.ne.s32.totalorder %s108, %s110
    %p117 = scmp.eq.s32.totalorder %s16, 1
    %p118 = por %p116, %p117
    %p119 = scmp.ne.s32.totalorder %s110, %s111
    %p120 = scmp.eq.s32.totalorder %s16, 0
    %p121 = por %p119, %p120
    %p122 = scmp.ne.s32.totalorder %s110, %s111
    %p123 = scmp.eq.s32.totalorder %s17, 1
    %p124 = por %p122, %p123
    %p126 = scmp.ne.s32.totalorder %s111, %s125
    %p127 = scmp.eq.s32.totalorder %s17, 0
    %p128 = por %p126, %p127
    %s129 = ssub.s32 %s11, %s18
    %p130 = scmp.eq.s32.totalorder %s129, 0
    %s132 = sadd.s32 %s131, 1
    %s133 = scalar_select %p130, %s131, %s132
    %p136 = pneg %p130
    %p137 = scmp.eq.s32.totalorder %s11, 1
    %p138 = por %p136, %p137
    %p139 = scmp.ne.s32.totalorder %s131, %s134
    %p140 = scmp.eq.s32.totalorder %s11, 0
    %p141 = por %p139, %p140
    %p142 = scmp.ne.s32.totalorder %s131, %s134
    %p143 = scmp.eq.s32.totalorder %s16, 1
    %p144 = por %p142, %p143
    %p145 = scmp.ne.s32.totalorder %s134, %s135
    %p146 = scmp.eq.s32.totalorder %s16, 0
    %p147 = por %p145, %p146
    %p148 = scmp.ne.s32.totalorder %s134, %s135
    %p149 = scmp.eq.s32.totalorder %s17, 1
    %p150 = por %p148, %p149
    %p152 = scmp.ne.s32.totalorder %s135, %s151
    %p153 = scmp.eq.s32.totalorder %s17, 0
    %p154 = por %p152, %p153
    %p155 = scmp.le.s32.totalorder 1, %s11
    %p156 = scmp.lt.s32.totalorder %s11, 3
    %p157 = pnand %p155, %p156
    %p158 = pneg %p157
    // Predicated region
    $region9: #{stconv_forward.4} parent=5 // pred_check
      _
    $region10: #{stconv_forward.4} parent=5 // pred_check_branch
      %160 = sbr.rel (%p157) target = $region12
    $region11: #{stconv_forward.4} parent=5 // pred_region
      %s161 = ssub.s32 %s11, 1
      // Predicated region
      $region13: #{stconv_forward.4} parent=11 // pred_check
        %p162 = pneg %p58
      $region14: #{stconv_forward.4} parent=11 // pred_check_branch
        %164 = sbr.rel (%p162) target = $region16
      $region15: #{stconv_forward.4} parent=11 // pred_region
        _
      $region16: #{stconv_forward.4} parent=11 // pred_fallthru
        _
      // Predicated region
      $region17: #{stconv_forward.4} parent=11 // pred_check
        %p165 = pneg %p79
      $region18: #{stconv_forward.4} parent=11 // pred_check_branch
        %167 = sbr.rel (%p165) target = $region20
      $region19: #{stconv_forward.4} parent=11 // pred_region
        _
      $region20: #{stconv_forward.4} parent=11 // pred_fallthru
        _
      // Predicated region
      $region21: #{stconv_forward.4} parent=11 // pred_check
        %p168 = pneg %p100
      $region22: #{stconv_forward.4} parent=11 // pred_check_branch
        %170 = sbr.rel (%p168) target = $region24
      $region23: #{stconv_forward.4} parent=11 // pred_region
        _
      $region24: #{stconv_forward.4} parent=11 // pred_fallthru
        _
      // Predicated region
      $region25: #{stconv_forward.4} parent=11 // pred_check
        %p171 = pneg %p121
      $region26: #{stconv_forward.4} parent=11 // pred_check_branch
        %173 = sbr.rel (%p171) target = $region28
      $region27: #{stconv_forward.4} parent=11 // pred_region
        _
      $region28: #{stconv_forward.4} parent=11 // pred_fallthru
        _
    $region12: #{stconv_forward.4} parent=5 // pred_fallthru
      _
    %p174 = scmp.lt.s32.totalorder %s11, 2
    // Predicated region
    $region29: #{stconv_forward.4} parent=5 // pred_check
      %p175 = pneg %p174
    $region30: #{stconv_forward.4} parent=5 // pred_check_branch
      %177 = sbr.rel (%p175) target = $region32
    $region31: #{stconv_forward.4} parent=5 // pred_region
      // Predicated region
      $region33: #{stconv_forward.4} parent=31 // pred_check
        %p178 = pneg %p31
      $region34: #{stconv_forward.4} parent=31 // pred_check_branch
        %180 = sbr.rel (%p178) target = $region36
      $region35: #{stconv_forward.4} parent=31 // pred_region
        %s181 = smul.u32 8, %s11
        %p182 = scmp.lt.s32.totalorder %s181, 15
        %s183 = scalar_select %p182, %s181, 15
        %s184 = smul.addr %s183, 8
        %s185 = scalar_lea.vmem %s0, %s184
        %s186 = smul.u32 8, %s11
      $region36: #{stconv_forward.4} parent=31 // pred_fallthru
        _
    $region32: #{stconv_forward.4} parent=5 // pred_fallthru
      _
    %p187 = scmp.le.s32.totalorder 1, %s11
    %p188 = scmp.lt.s32.totalorder %s11, 3
    %p189 = pnand %p187, %p188
    %p190 = pneg %p189
    // Predicated region
    $region37: #{stconv_forward.4} parent=5 // pred_check
      _
    $region38: #{stconv_forward.4} parent=5 // pred_check_branch
      %192 = sbr.rel (%p189) target = $region40
    $region39: #{stconv_forward.4} parent=5 // pred_region
      %s193 = ssub.s32 %s11, 1
      %s194 = smul.u32 8, %s16
      %p195 = scmp.lt.s32.totalorder %s194, 15
      %s196 = scalar_select %p195, %s194, 15
      %s197 = smul.addr %s196, 8
      %s198 = scalar_lea.vmem %s0, %s197
      %p199 = pneg %p37
      %p200 = pneg %p34
      %p201 = pneg %p58
      %p202 = pneg %p55
      %p203 = pneg %p79
      %p204 = pneg %p76
      %p205 = pneg %p100
      %p206 = pneg %p97
      %p207 = pneg %p121
      %p208 = pneg %p118
      %p209 = pneg %p147
      %p210 = pneg %p144
      %s211 = smul.u32 8, %s16
      %p212 = scmp.lt.s32.totalorder %s211, 15
      %s213 = scalar_select %p212, %s211, 15
      %s214 = smul.addr %s213, 8
      %s215 = scalar_lea.vmem %s5, %s214
      %s216 = smul.u32 8, %s16
      %p217 = scmp.lt.s32.totalorder %s216, 15
      %s218 = scalar_select %p217, %s216, 15
      %s219 = smul.addr %s218, 8
      %s220 = scalar_lea.vmem %s0, %s219
      %s221 = smul.u32 8, %s16
      %s222 = smul.u32 8, %s16
      %p223 = scmp.lt.s32.totalorder %s222, 15
      %s224 = scalar_select %p223, %s222, 15
      %s225 = smul.addr %s224, 8
      %s226 = scalar_lea.vmem %s5, %s225
      %s227 = smul.u32 8, %s16
      %v229 = vld [vmem:[%s220] sm:$0xff]
      %v230 = vld [vmem:[%s220 + $0x8] sm:$0xff]
      %v231 = vld [vmem:[%s220 + $0x10] sm:$0xff]
      %v232 = vld [vmem:[%s220 + $0x18] sm:$0xff]
      %v233 = vld [vmem:[%s220 + $0x20] sm:$0xff]
      %v234 = vld [vmem:[%s220 + $0x28] sm:$0xff]
      %v235 = vld [vmem:[%s220 + $0x30] sm:$0xff]
      %v236 = vld [vmem:[%s220 + $0x38] sm:$0xff]
      %v237 = vpack.c.bf16 %v229, %v229
      %v238 = vpack.c.bf16 %v230, %v230
      %v239 = vpack.c.bf16 %v231, %v231
      %v240 = vpack.c.bf16 %v232, %v232
      %v241 = vpack.c.bf16 %v233, %v233
      %v242 = vpack.c.bf16 %v234, %v234
      %v243 = vpack.c.bf16 %v235, %v235
      %v244 = vpack.c.bf16 %v236, %v236
      %v245 = vld [vmem:[%s2] sm:$0xf]
      %v254 = vunpack.c.l.b16 %v237
      %v255 = vunpack.c.l.b16 %v238
      %v256 = vunpack.c.l.b16 %v239
      %v257 = vunpack.c.l.b16 %v240
      %v258 = vunpack.c.l.b16 %v241
      %v259 = vunpack.c.l.b16 %v242
      %v260 = vunpack.c.l.b16 %v243
      %v261 = vunpack.c.l.b16 %v244
      %v262 = vpack.c.b16 %v255, %v254
      %v263 = vpack.c.b16 %v257, %v256
      %v264 = vpack.c.b16 %v259, %v258
      %v265 = vpack.c.b16 %v261, %v260
      %vm266 = vcmask 64512
      %v268 = vsel %vm266, %v262, 0
      %v271 = vsel %vm266, %v263, 0
      %v274 = vsel %vm266, %v264, 0
      %v277 = vsel %vm266, %v265, 0
      %vm279 = vcmask 1043456
      %v281 = vsel %vm279, %v245, 0
      %283 = vmatpush.bf16.msra.mxu0 0
      %284 = vmatpush.bf16.msra.mxu0 0
      %285 = vmatpush.bf16.msra.mxu0 0
      %286 = vmatpush.bf16.msra.mxu0 0
      %287 = vmatpush.bf16.msra.mxu0 0
      %288 = vmatpush.bf16.msra.mxu0 0
      %289 = vmatpush.bf16.msra.mxu0 0
      %290 = vmatpush.bf16.msra.mxu0 %v281
      %291 = vmatmul.bf16.gmra.mxu0 %v268
      %v292 = vpop.f32.mrf.mxu0
      %v293 = vadd.f32 0.0, %v292
      %v294 = vpop.f32.mrf.mxu0
      %v295 = vadd.f32 0.0, %v294
      %296 = vmatmul.bf16.gmra.mxu0 %v271
      %v297 = vpop.f32.mrf.mxu0
      %v298 = vadd.f32 0.0, %v297
      %v299 = vpop.f32.mrf.mxu0
      %v300 = vadd.f32 0.0, %v299
      %301 = vmatmul.bf16.gmra.mxu0 %v274
      %v302 = vpop.f32.mrf.mxu0
      %v303 = vadd.f32 0.0, %v302
      %v304 = vpop.f32.mrf.mxu0
      %v305 = vadd.f32 0.0, %v304
      %306 = vmatmul.bf16.gmra.mxu0 %v277
      %v307 = vpop.f32.mrf.mxu0
      %v308 = vadd.f32 0.0, %v307
      %v309 = vpop.f32.mrf.mxu0
      %v310 = vadd.f32 0.0, %v309
      %311 = vdwg.mxu0
      %v312 = vld [vmem:[%s3] sm:$0xf]
      %v314 = vsel %vm279, %v312, 0
      %316 = vmatpush.bf16.msra.mxu0 0
      %317 = vmatpush.bf16.msra.mxu0 0
      %318 = vmatpush.bf16.msra.mxu0 0
      %319 = vmatpush.bf16.msra.mxu0 0
      %320 = vmatpush.bf16.msra.mxu0 0
      %321 = vmatpush.bf16.msra.mxu0 0
      %322 = vmatpush.bf16.msra.mxu0 0
      %323 = vmatpush.bf16.msra.mxu0 %v314
      %324 = vmatmul.bf16.gmra.mxu0 %v268
      %v325 = vpop.f32.mrf.mxu0
      %v326 = vadd.f32 0.0, %v325
      %v327 = vpop.f32.mrf.mxu0
      %v328 = vadd.f32 0.0, %v327
      %329 = vmatmul.bf16.gmra.mxu0 %v271
      %v330 = vpop.f32.mrf.mxu0
      %v331 = vadd.f32 0.0, %v330
      %v332 = vpop.f32.mrf.mxu0
      %v333 = vadd.f32 0.0, %v332
      %334 = vmatmul.bf16.gmra.mxu0 %v274
      %v335 = vpop.f32.mrf.mxu0
      %v336 = vadd.f32 0.0, %v335
      %v337 = vpop.f32.mrf.mxu0
      %v338 = vadd.f32 0.0, %v337
      %339 = vmatmul.bf16.gmra.mxu0 %v277
      %v340 = vpop.f32.mrf.mxu0
      %v341 = vadd.f32 0.0, %v340
      %v342 = vpop.f32.mrf.mxu0
      %v343 = vadd.f32 0.0, %v342
      %344 = vdwg.mxu0
      %v345 = vld [vmem:[%s1] sm:$0xf]
      %v346 = vpack.c.bf16 %v293, %v293
      %v347 = vpack.c.bf16 %v295, %v295
      %v348 = vpack.c.bf16 %v298, %v298
      %v349 = vpack.c.bf16 %v300, %v300
      %v350 = vpack.c.bf16 %v303, %v303
      %v351 = vpack.c.bf16 %v305, %v305
      %v352 = vpack.c.bf16 %v308, %v308
      %v353 = vpack.c.bf16 %v310, %v310
      %v355 = vsel %vm266, %v345, 0
      %v358 = vsel %vm279, %v346, 0
      %360 = vmatpush.bf16.msra.mxu0 0
      %361 = vmatpush.bf16.msra.mxu0 0
      %362 = vmatpush.bf16.msra.mxu0 0
      %363 = vmatpush.bf16.msra.mxu0 0
      %364 = vmatpush.bf16.msra.mxu0 0
      %365 = vmatpush.bf16.msra.mxu0 0
      %366 = vmatpush.bf16.msra.mxu0 0
      %367 = vmatpush.bf16.msra.mxu0 %v358
      %368 = vmatmul.bf16.gmra.mxu0 %v355
      %v369 = vpop.f32.mrf.mxu0
      %v370 = vadd.f32 %v326, %v369
      %v371 = vpop.f32.mrf.mxu0
      %372 = vdwg.mxu0
      %v374 = vsel %vm279, %v347, 0
      %376 = vmatpush.bf16.msra.mxu0 0
      %377 = vmatpush.bf16.msra.mxu0 0
      %378 = vmatpush.bf16.msra.mxu0 0
      %379 = vmatpush.bf16.msra.mxu0 0
      %380 = vmatpush.bf16.msra.mxu0 0
      %381 = vmatpush.bf16.msra.mxu0 0
      %382 = vmatpush.bf16.msra.mxu0 0
      %383 = vmatpush.bf16.msra.mxu0 %v374
      %384 = vmatmul.bf16.gmra.mxu0 %v355
      %v385 = vpop.f32.mrf.mxu0
      %v386 = vadd.f32 %v328, %v385
      %v387 = vpop.f32.mrf.mxu0
      %388 = vdwg.mxu0
      %v390 = vsel %vm279, %v348, 0
      %392 = vmatpush.bf16.msra.mxu0 0
      %393 = vmatpush.bf16.msra.mxu0 0
      %394 = vmatpush.bf16.msra.mxu0 0
      %395 = vmatpush.bf16.msra.mxu0 0
      %396 = vmatpush.bf16.msra.mxu0 0
      %397 = vmatpush.bf16.msra.mxu0 0
      %398 = vmatpush.bf16.msra.mxu0 0
      %399 = vmatpush.bf16.msra.mxu0 %v390
      %400 = vmatmul.bf16.gmra.mxu0 %v355
      %v401 = vpop.f32.mrf.mxu0
      %v402 = vadd.f32 %v331, %v401
      %v403 = vpop.f32.mrf.mxu0
      %404 = vdwg.mxu0
      %v406 = vsel %vm279, %v349, 0
      %408 = vmatpush.bf16.msra.mxu0 0
      %409 = vmatpush.bf16.msra.mxu0 0
      %410 = vmatpush.bf16.msra.mxu0 0
      %411 = vmatpush.bf16.msra.mxu0 0
      %412 = vmatpush.bf16.msra.mxu0 0
      %413 = vmatpush.bf16.msra.mxu0 0
      %414 = vmatpush.bf16.msra.mxu0 0
      %415 = vmatpush.bf16.msra.mxu0 %v406
      %416 = vmatmul.bf16.gmra.mxu0 %v355
      %v417 = vpop.f32.mrf.mxu0
      %v418 = vadd.f32 %v333, %v417
      %v419 = vpop.f32.mrf.mxu0
      %420 = vdwg.mxu0
      %v422 = vsel %vm279, %v350, 0
      %424 = vmatpush.bf16.msra.mxu0 0
      %425 = vmatpush.bf16.msra.mxu0 0
      %426 = vmatpush.bf16.msra.mxu0 0
      %427 = vmatpush.bf16.msra.mxu0 0
      %428 = vmatpush.bf16.msra.mxu0 0
      %429 = vmatpush.bf16.msra.mxu0 0
      %430 = vmatpush.bf16.msra.mxu0 0
      %431 = vmatpush.bf16.msra.mxu0 %v422
      %432 = vmatmul.bf16.gmra.mxu0 %v355
      %v433 = vpop.f32.mrf.mxu0
      %v434 = vadd.f32 %v336, %v433
      %v435 = vpop.f32.mrf.mxu0
      %436 = vdwg.mxu0
      %v438 = vsel %vm279, %v351, 0
      %440 = vmatpush.bf16.msra.mxu0 0
      %441 = vmatpush.bf16.msra.mxu0 0
      %442 = vmatpush.bf16.msra.mxu0 0
      %443 = vmatpush.bf16.msra.mxu0 0
      %444 = vmatpush.bf16.msra.mxu0 0
      %445 = vmatpush.bf16.msra.mxu0 0
      %446 = vmatpush.bf16.msra.mxu0 0
      %447 = vmatpush.bf16.msra.mxu0 %v438
      %448 = vmatmul.bf16.gmra.mxu0 %v355
      %v449 = vpop.f32.mrf.mxu0
      %v450 = vadd.f32 %v338, %v449
      %v451 = vpop.f32.mrf.mxu0
      %452 = vdwg.mxu0
      %v454 = vsel %vm279, %v352, 0
      %456 = vmatpush.bf16.msra.mxu0 0
      %457 = vmatpush.bf16.msra.mxu0 0
      %458 = vmatpush.bf16.msra.mxu0 0
      %459 = vmatpush.bf16.msra.mxu0 0
      %460 = vmatpush.bf16.msra.mxu0 0
      %461 = vmatpush.bf16.msra.mxu0 0
      %462 = vmatpush.bf16.msra.mxu0 0
      %463 = vmatpush.bf16.msra.mxu0 %v454
      %464 = vmatmul.bf16.gmra.mxu0 %v355
      %v465 = vpop.f32.mrf.mxu0
      %v466 = vadd.f32 %v341, %v465
      %v467 = vpop.f32.mrf.mxu0
      %468 = vdwg.mxu0
      %v470 = vsel %vm279, %v353, 0
      %472 = vmatpush.bf16.msra.mxu0 0
      %473 = vmatpush.bf16.msra.mxu0 0
      %474 = vmatpush.bf16.msra.mxu0 0
      %475 = vmatpush.bf16.msra.mxu0 0
      %476 = vmatpush.bf16.msra.mxu0 0
      %477 = vmatpush.bf16.msra.mxu0 0
      %478 = vmatpush.bf16.msra.mxu0 0
      %479 = vmatpush.bf16.msra.mxu0 %v470
      %480 = vmatmul.bf16.gmra.mxu0 %v355
      %v481 = vpop.f32.mrf.mxu0
      %v482 = vadd.f32 %v343, %v481
      %v483 = vpop.f32.mrf.mxu0
      %484 = vdwg.mxu0
      %v485 = vld [vmem:[%s4] sm:$0x1]
      %v487 = vperm.slane %v485, 0
      %v489 = vadd.f32 %v370, %v487
      %v490 = vadd.f32 %v386, %v487
      %v491 = vadd.f32 %v402, %v487
      %v492 = vadd.f32 %v418, %v487
      %v493 = vadd.f32 %v434, %v487
      %v494 = vadd.f32 %v450, %v487
      %v495 = vadd.f32 %v466, %v487
      %v496 = vadd.f32 %v482, %v487
      %v497 = vmul.f32 %v489, 0.5
      %v498 = vmul.f32 %v490, 0.5
      %v499 = vmul.f32 %v491, 0.5
      %v500 = vmul.f32 %v492, 0.5
      %v501 = vmul.f32 %v493, 0.5
      %v502 = vmul.f32 %v494, 0.5
      %v503 = vmul.f32 %v495, 0.5
      %v504 = vmul.f32 %v496, 0.5
      %v505 = vmul.f32 %v489, 0.70710677
      %v506 = vmul.f32 %v490, 0.70710677
      %v507 = vmul.f32 %v491, 0.70710677
      %v508 = vmul.f32 %v492, 0.70710677
      %v509 = vmul.f32 %v493, 0.70710677
      %v510 = vmul.f32 %v494, 0.70710677
      %v511 = vmul.f32 %v495, 0.70710677
      %v512 = vmul.f32 %v496, 0.70710677
      %v513 = vmul.f32 %v505, %v505
      %v514 = vmin.f32 16.0, %v513
      %v515 = vmul.f32 %v514, 2.1237322e-06
      %v516 = vadd.f32 %v515, 0.00028619796
      %v517 = vmul.f32 %v514, %v516
      %v518 = vadd.f32 %v517, 0.0036580483
      %v519 = vmul.f32 %v514, %v518
      %v520 = vadd.f32 %v519, 0.05243302
      %v521 = vmul.f32 %v514, %v520
      %v522 = vadd.f32 %v521, 0.18741608
      %v523 = vmul.f32 %v514, %v522
      %v524 = vadd.f32 %v523, 1.1283791
      %v525 = vmul.f32 %v505, %v524
      %v526 = vmul.f32 %v514, 3.8918573e-05
      %v527 = vadd.f32 %v526, 0.001143296
      %v528 = vmul.f32 %v514, %v527
      %v529 = vadd.f32 %v528, 0.014752088
      %v530 = vmul.f32 %v514, %v529
      %v531 = vadd.f32 %v530, 0.112945676
      %v532 = vmul.f32 %v514, %v531
      %v533 = vadd.f32 %v532, 0.4994258
      %v534 = vmul.f32 %v514, %v533
      %v535 = vadd.f32 %v534, 1.0
      %v536 = vrcp.pop %v535
      %v537 = vmul.f32 %v535, %v536
      %v538 = vsub.f32 1.0, %v537
      %v539 = vmul.f32 %v536, %v538
      %v540 = vadd.f32 %v536, %v539
      %vm541 = vweird.f32 %v535
      %vm542 = vweird.f32 %v536
      %vm543 = vmor %vm541, %vm542
      %v544 = vsel %vm543, %v536, %v540
      %v545 = vand.u32 2147483647, %v535
      %vm546 = vcmp.eq.f32.partialorder %v545, 8.507059e+37
      %v547 = vand.u32 %v535, 2147483648
      %v548 = vor.u32 1.1754944e-38, %v547
      %v549 = vsel %vm546, %v548, %v544
      %v550 = vmul.f32 %v525, %v549
      %v551 = vmin.f32 %v550, 1.0
      %v552 = vmax.f32 %v551, -1.0
      %v553 = vmul.f32 %v506, %v506
      %v554 = vmin.f32 16.0, %v553
      %v555 = vmul.f32 %v554, 2.1237322e-06
      %v556 = vadd.f32 %v555, 0.00028619796
      %v557 = vmul.f32 %v554, %v556
      %v558 = vadd.f32 %v557, 0.0036580483
      %v559 = vmul.f32 %v554, %v558
      %v560 = vadd.f32 %v559, 0.05243302
      %v561 = vmul.f32 %v554, %v560
      %v562 = vadd.f32 %v561, 0.18741608
      %v563 = vmul.f32 %v554, %v562
      %v564 = vadd.f32 %v563, 1.1283791
      %v565 = vmul.f32 %v506, %v564
      %v566 = vmul.f32 %v554, 3.8918573e-05
      %v567 = vadd.f32 %v566, 0.001143296
      %v568 = vmul.f32 %v554, %v567
      %v569 = vadd.f32 %v568, 0.014752088
      %v570 = vmul.f32 %v554, %v569
      %v571 = vadd.f32 %v570, 0.112945676
      %v572 = vmul.f32 %v554, %v571
      %v573 = vadd.f32 %v572, 0.4994258
      %v574 = vmul.f32 %v554, %v573
      %v575 = vadd.f32 %v574, 1.0
      %v576 = vrcp.pop %v575
      %v577 = vmul.f32 %v575, %v576
      %v578 = vsub.f32 1.0, %v577
      %v579 = vmul.f32 %v576, %v578
      %v580 = vadd.f32 %v576, %v579
      %vm581 = vweird.f32 %v575
      %vm582 = vweird.f32 %v576
      %vm583 = vmor %vm581, %vm582
      %v584 = vsel %vm583, %v576, %v580
      %v585 = vand.u32 2147483647, %v575
      %vm586 = vcmp.eq.f32.partialorder %v585, 8.507059e+37
      %v587 = vand.u32 %v575, 2147483648
      %v588 = vor.u32 1.1754944e-38, %v587
      %v589 = vsel %vm586, %v588, %v584
      %v590 = vmul.f32 %v565, %v589
      %v591 = vmin.f32 %v590, 1.0
      %v592 = vmax.f32 %v591, -1.0
      %v593 = vmul.f32 %v507, %v507
      %v594 = vmin.f32 16.0, %v593
      %v595 = vmul.f32 %v594, 2.1237322e-06
      %v596 = vadd.f32 %v595, 0.00028619796
      %v597 = vmul.f32 %v594, %v596
      %v598 = vadd.f32 %v597, 0.0036580483
      %v599 = vmul.f32 %v594, %v598
      %v600 = vadd.f32 %v599, 0.05243302
      %v601 = vmul.f32 %v594, %v600
      %v602 = vadd.f32 %v601, 0.18741608
      %v603 = vmul.f32 %v594, %v602
      %v604 = vadd.f32 %v603, 1.1283791
      %v605 = vmul.f32 %v507, %v604
      %v606 = vmul.f32 %v594, 3.8918573e-05
      %v607 = vadd.f32 %v606, 0.001143296
      %v608 = vmul.f32 %v594, %v607
      %v609 = vadd.f32 %v608, 0.014752088
      %v610 = vmul.f32 %v594, %v609
      %v611 = vadd.f32 %v610, 0.112945676
      %v612 = vmul.f32 %v594, %v611
      %v613 = vadd.f32 %v612, 0.4994258
      %v614 = vmul.f32 %v594, %v613
      %v615 = vadd.f32 %v614, 1.0
      %v616 = vrcp.pop %v615
      %v617 = vmul.f32 %v615, %v616
      %v618 = vsub.f32 1.0, %v617
      %v619 = vmul.f32 %v616, %v618
      %v620 = vadd.f32 %v616, %v619
      %vm621 = vweird.f32 %v615
      %vm622 = vweird.f32 %v616
      %vm623 = vmor %vm621, %vm622
      %v624 = vsel %vm623, %v616, %v620
      %v625 = vand.u32 2147483647, %v615
      %vm626 = vcmp.eq.f32.partialorder %v625, 8.507059e+37
      %v627 = vand.u32 %v615, 2147483648
      %v628 = vor.u32 1.1754944e-38, %v627
      %v629 = vsel %vm626, %v628, %v624
      %v630 = vmul.f32 %v605, %v629
      %v631 = vmin.f32 %v630, 1.0
      %v632 = vmax.f32 %v631, -1.0
      %v633 = vmul.f32 %v508, %v508
      %v634 = vmin.f32 16.0, %v633
      %v635 = vmul.f32 %v634, 2.1237322e-06
      %v636 = vadd.f32 %v635, 0.00028619796
      %v637 = vmul.f32 %v634, %v636
      %v638 = vadd.f32 %v637, 0.0036580483
      %v639 = vmul.f32 %v634, %v638
      %v640 = vadd.f32 %v639, 0.05243302
      %v641 = vmul.f32 %v634, %v640
      %v642 = vadd.f32 %v641, 0.18741608
      %v643 = vmul.f32 %v634, %v642
      %v644 = vadd.f32 %v643, 1.1283791
      %v645 = vmul.f32 %v508, %v644
      %v646 = vmul.f32 %v634, 3.8918573e-05
      %v647 = vadd.f32 %v646, 0.001143296
      %v648 = vmul.f32 %v634, %v647
      %v649 = vadd.f32 %v648, 0.014752088
      %v650 = vmul.f32 %v634, %v649
      %v651 = vadd.f32 %v650, 0.112945676
      %v652 = vmul.f32 %v634, %v651
      %v653 = vadd.f32 %v652, 0.4994258
      %v654 = vmul.f32 %v634, %v653
      %v655 = vadd.f32 %v654, 1.0
      %v656 = vrcp.pop %v655
      %v657 = vmul.f32 %v655, %v656
      %v658 = vsub.f32 1.0, %v657
      %v659 = vmul.f32 %v656, %v658
      %v660 = vadd.f32 %v656, %v659
      %vm661 = vweird.f32 %v655
      %vm662 = vweird.f32 %v656
      %vm663 = vmor %vm661, %vm662
      %v664 = vsel %vm663, %v656, %v660
      %v665 = vand.u32 2147483647, %v655
      %vm666 = vcmp.eq.f32.partialorder %v665, 8.507059e+37
      %v667 = vand.u32 %v655, 2147483648
      %v668 = vor.u32 1.1754944e-38, %v667
      %v669 = vsel %vm666, %v668, %v664
      %v670 = vmul.f32 %v645, %v669
      %v671 = vmin.f32 %v670, 1.0
      %v672 = vmax.f32 %v671, -1.0
      %v673 = vmul.f32 %v509, %v509
      %v674 = vmin.f32 16.0, %v673
      %v675 = vmul.f32 %v674, 2.1237322e-06
      %v676 = vadd.f32 %v675, 0.00028619796
      %v677 = vmul.f32 %v674, %v676
      %v678 = vadd.f32 %v677, 0.0036580483
      %v679 = vmul.f32 %v674, %v678
      %v680 = vadd.f32 %v679, 0.05243302
      %v681 = vmul.f32 %v674, %v680
      %v682 = vadd.f32 %v681, 0.18741608
      %v683 = vmul.f32 %v674, %v682
      %v684 = vadd.f32 %v683, 1.1283791
      %v685 = vmul.f32 %v509, %v684
      %v686 = vmul.f32 %v674, 3.8918573e-05
      %v687 = vadd.f32 %v686, 0.001143296
      %v688 = vmul.f32 %v674, %v687
      %v689 = vadd.f32 %v688, 0.014752088
      %v690 = vmul.f32 %v674, %v689
      %v691 = vadd.f32 %v690, 0.112945676
      %v692 = vmul.f32 %v674, %v691
      %v693 = vadd.f32 %v692, 0.4994258
      %v694 = vmul.f32 %v674, %v693
      %v695 = vadd.f32 %v694, 1.0
      %v696 = vrcp.pop %v695
      %v697 = vmul.f32 %v695, %v696
      %v698 = vsub.f32 1.0, %v697
      %v699 = vmul.f32 %v696, %v698
      %v700 = vadd.f32 %v696, %v699
      %vm701 = vweird.f32 %v695
      %vm702 = vweird.f32 %v696
      %vm703 = vmor %vm701, %vm702
      %v704 = vsel %vm703, %v696, %v700
      %v705 = vand.u32 2147483647, %v695
      %vm706 = vcmp.eq.f32.partialorder %v705, 8.507059e+37
      %v707 = vand.u32 %v695, 2147483648
      %v708 = vor.u32 1.1754944e-38, %v707
      %v709 = vsel %vm706, %v708, %v704
      %v710 = vmul.f32 %v685, %v709
      %v711 = vmin.f32 %v710, 1.0
      %v712 = vmax.f32 %v711, -1.0
      %v713 = vmul.f32 %v510, %v510
      %v714 = vmin.f32 16.0, %v713
      %v715 = vmul.f32 %v714, 2.1237322e-06
      %v716 = vadd.f32 %v715, 0.00028619796
      %v717 = vmul.f32 %v714, %v716
      %v718 = vadd.f32 %v717, 0.0036580483
      %v719 = vmul.f32 %v714, %v718
      %v720 = vadd.f32 %v719, 0.05243302
      %v721 = vmul.f32 %v714, %v720
      %v722 = vadd.f32 %v721, 0.18741608
      %v723 = vmul.f32 %v714, %v722
      %v724 = vadd.f32 %v723, 1.1283791
      %v725 = vmul.f32 %v510, %v724
      %v726 = vmul.f32 %v714, 3.8918573e-05
      %v727 = vadd.f32 %v726, 0.001143296
      %v728 = vmul.f32 %v714, %v727
      %v729 = vadd.f32 %v728, 0.014752088
      %v730 = vmul.f32 %v714, %v729
      %v731 = vadd.f32 %v730, 0.112945676
      %v732 = vmul.f32 %v714, %v731
      %v733 = vadd.f32 %v732, 0.4994258
      %v734 = vmul.f32 %v714, %v733
      %v735 = vadd.f32 %v734, 1.0
      %v736 = vrcp.pop %v735
      %v737 = vmul.f32 %v735, %v736
      %v738 = vsub.f32 1.0, %v737
      %v739 = vmul.f32 %v736, %v738
      %v740 = vadd.f32 %v736, %v739
      %vm741 = vweird.f32 %v735
      %vm742 = vweird.f32 %v736
      %vm743 = vmor %vm741, %vm742
      %v744 = vsel %vm743, %v736, %v740
      %v745 = vand.u32 2147483647, %v735
      %vm746 = vcmp.eq.f32.partialorder %v745, 8.507059e+37
      %v747 = vand.u32 %v735, 2147483648
      %v748 = vor.u32 1.1754944e-38, %v747
      %v749 = vsel %vm746, %v748, %v744
      %v750 = vmul.f32 %v725, %v749
      %v751 = vmin.f32 %v750, 1.0
      %v752 = vmax.f32 %v751, -1.0
      %v753 = vmul.f32 %v511, %v511
      %v754 = vmin.f32 16.0, %v753
      %v755 = vmul.f32 %v754, 2.1237322e-06
      %v756 = vadd.f32 %v755, 0.00028619796
      %v757 = vmul.f32 %v754, %v756
      %v758 = vadd.f32 %v757, 0.0036580483
      %v759 = vmul.f32 %v754, %v758
      %v760 = vadd.f32 %v759, 0.05243302
      %v761 = vmul.f32 %v754, %v760
      %v762 = vadd.f32 %v761, 0.18741608
      %v763 = vmul.f32 %v754, %v762
      %v764 = vadd.f32 %v763, 1.1283791
      %v765 = vmul.f32 %v511, %v764
      %v766 = vmul.f32 %v754, 3.8918573e-05
      %v767 = vadd.f32 %v766, 0.001143296
      %v768 = vmul.f32 %v754, %v767
      %v769 = vadd.f32 %v768, 0.014752088
      %v770 = vmul.f32 %v754, %v769
      %v771 = vadd.f32 %v770, 0.112945676
      %v772 = vmul.f32 %v754, %v771
      %v773 = vadd.f32 %v772, 0.4994258
      %v774 = vmul.f32 %v754, %v773
      %v775 = vadd.f32 %v774, 1.0
      %v776 = vrcp.pop %v775
      %v777 = vmul.f32 %v775, %v776
      %v778 = vsub.f32 1.0, %v777
      %v779 = vmul.f32 %v776, %v778
      %v780 = vadd.f32 %v776, %v779
      %vm781 = vweird.f32 %v775
      %vm782 = vweird.f32 %v776
      %vm783 = vmor %vm781, %vm782
      %v784 = vsel %vm783, %v776, %v780
      %v785 = vand.u32 2147483647, %v775
      %vm786 = vcmp.eq.f32.partialorder %v785, 8.507059e+37
      %v787 = vand.u32 %v775, 2147483648
      %v788 = vor.u32 1.1754944e-38, %v787
      %v789 = vsel %vm786, %v788, %v784
      %v790 = vmul.f32 %v765, %v789
      %v791 = vmin.f32 %v790, 1.0
      %v792 = vmax.f32 %v791, -1.0
      %v793 = vmul.f32 %v512, %v512
      %v794 = vmin.f32 16.0, %v793
      %v795 = vmul.f32 %v794, 2.1237322e-06
      %v796 = vadd.f32 %v795, 0.00028619796
      %v797 = vmul.f32 %v794, %v796
      %v798 = vadd.f32 %v797, 0.0036580483
      %v799 = vmul.f32 %v794, %v798
      %v800 = vadd.f32 %v799, 0.05243302
      %v801 = vmul.f32 %v794, %v800
      %v802 = vadd.f32 %v801, 0.18741608
      %v803 = vmul.f32 %v794, %v802
      %v804 = vadd.f32 %v803, 1.1283791
      %v805 = vmul.f32 %v512, %v804
      %v806 = vmul.f32 %v794, 3.8918573e-05
      %v807 = vadd.f32 %v806, 0.001143296
      %v808 = vmul.f32 %v794, %v807
      %v809 = vadd.f32 %v808, 0.014752088
      %v810 = vmul.f32 %v794, %v809
      %v811 = vadd.f32 %v810, 0.112945676
      %v812 = vmul.f32 %v794, %v811
      %v813 = vadd.f32 %v812, 0.4994258
      %v814 = vmul.f32 %v794, %v813
      %v815 = vadd.f32 %v814, 1.0
      %v816 = vrcp.pop %v815
      %v817 = vmul.f32 %v815, %v816
      %v818 = vsub.f32 1.0, %v817
      %v819 = vmul.f32 %v816, %v818
      %v820 = vadd.f32 %v816, %v819
      %vm821 = vweird.f32 %v815
      %vm822 = vweird.f32 %v816
      %vm823 = vmor %vm821, %vm822
      %v824 = vsel %vm823, %v816, %v820
      %v825 = vand.u32 2147483647, %v815
      %vm826 = vcmp.eq.f32.partialorder %v825, 8.507059e+37
      %v827 = vand.u32 %v815, 2147483648
      %v828 = vor.u32 1.1754944e-38, %v827
      %v829 = vsel %vm826, %v828, %v824
      %v830 = vmul.f32 %v805, %v829
      %v831 = vmin.f32 %v830, 1.0
      %v832 = vmax.f32 %v831, -1.0
      %v833 = vadd.f32 %v552, 1.0
      %v834 = vadd.f32 %v592, 1.0
      %v835 = vadd.f32 %v632, 1.0
      %v836 = vadd.f32 %v672, 1.0
      %v837 = vadd.f32 %v712, 1.0
      %v838 = vadd.f32 %v752, 1.0
      %v839 = vadd.f32 %v792, 1.0
      %v840 = vadd.f32 %v832, 1.0
      %v841 = vmul.f32 %v497, %v833
      %v842 = vmul.f32 %v498, %v834
      %v843 = vmul.f32 %v499, %v835
      %v844 = vmul.f32 %v500, %v836
      %v845 = vmul.f32 %v501, %v837
      %v846 = vmul.f32 %v502, %v838
      %v847 = vmul.f32 %v503, %v839
      %v848 = vmul.f32 %v504, %v840
      %849 = vst.msk [vmem:[%s226] sm:$0xff] %vm266, %v841
      %850 = vst.msk [vmem:[%s226 + $0x8] sm:$0xff] %vm266, %v842
      %851 = vst.msk [vmem:[%s226 + $0x10] sm:$0xff] %vm266, %v843
      %852 = vst.msk [vmem:[%s226 + $0x18] sm:$0xff] %vm266, %v844
      %853 = vst.msk [vmem:[%s226 + $0x20] sm:$0xff] %vm266, %v845
      %854 = vst.msk [vmem:[%s226 + $0x28] sm:$0xff] %vm266, %v846
      %855 = vst.msk [vmem:[%s226 + $0x30] sm:$0xff] %vm266, %v847
      %856 = vst.msk [vmem:[%s226 + $0x38] sm:$0xff] %vm266, %v848
      %s857 = smul.u32 8, %s16
      %p858 = scmp.lt.s32.totalorder %s857, 15
      %s859 = scalar_select %p858, %s857, 15
      %s860 = smul.addr %s859, 8
      %s861 = scalar_lea.vmem %s5, %s860
      // Predicated region
      $region41: #{stconv_forward.4} parent=39 // pred_check
        %p862 = pneg %p144
      $region42: #{stconv_forward.4} parent=39 // pred_check_branch
        %864 = sbr.rel (%p862) target = $region44
      $region43: #{stconv_forward.4} parent=39 // pred_region
        %s865 = smul.u32 8, %s16
      $region44: #{stconv_forward.4} parent=39 // pred_fallthru
        _
    $region40: #{stconv_forward.4} parent=5 // pred_fallthru
      _
    %p866 = scmp.le.s32.totalorder 2, %s11
    // Predicated region
    $region45: #{stconv_forward.4} parent=5 // pred_check
      %p867 = pneg %p866
    $region46: #{stconv_forward.4} parent=5 // pred_check_branch
      %869 = sbr.rel (%p867) target = $region48
    $region47: #{stconv_forward.4} parent=5 // pred_region
      %s870 = ssub.s32 %s11, 2
      // Predicated region
      $region49: #{stconv_forward.4} parent=47 // pred_check
        %p871 = pneg %p150
      $region50: #{stconv_forward.4} parent=47 // pred_check_branch
        %873 = sbr.rel (%p871) target = $region52
      $region51: #{stconv_forward.4} parent=47 // pred_region
        %s874 = smul.u32 8, %s17
        %p875 = scmp.lt.s32.totalorder %s874, 15
        %s876 = scalar_select %p875, %s874, 15
        %s877 = smul.addr %s876, 8
        %s878 = scalar_lea.vmem %s5, %s877
      $region52: #{stconv_forward.4} parent=47 // pred_fallthru
        _
    $region48: #{stconv_forward.4} parent=5 // pred_fallthru
      _
  $region6: #{stconv_forward.4} parent=0 // loop_footer
    %s15 = sadd.s32 1, %s11
  $region7: #{stconv_forward.4} parent=0 // loop_footer_branch
    %10 = sbr.rel target = $region3
  $region8: #{stconv_forward.4} parent=0 // loop_exit
    _

</llo_original>
